<compile_context>
chip_gen: v5e
topology: v5e:2x2
jax: 0.10.0
libtpu: 0.0.40
codegen_flags: <defaults>
</compile_context>

<pallas_src>
import jax
import jax.numpy as jnp
from jax.experimental import pallas as pl
from jax.experimental.pallas import tpu as pltpu

EMB = 64
PACK = 2 * EMB            # packed embedding row: lanes [0:64]=GMF, [64:128]=MLP
MLP_DIMS = [128, 64, 32, 16]
BN_EPS = 1e-5
NUM_CLASSES = 5
NPAD = 8                  # logit lanes written to HBM (5 real + 3 padded)


def _round_up(x, m):
    return (x + m - 1) // m * m


def _choose_tb(batch, tb_max):
    """Batch tile: multiple of 8, >=2 grid steps when possible (v7x has 2 TCs),
    and padding waste bounded to ~12.5%."""
    b8 = _round_up(batch, 8)
    tb = max(8, min(_round_up(tb_max, 8), b8))
    if tb == b8 and b8 >= 16:                 # single-step grid -> split for megacore
        tb = _round_up(b8 // 2, 8)
    while tb > 8:
        padded = _round_up(batch, tb)
        if (padded - batch) * 8 <= padded:    # waste <= 12.5%
            break
        tb = max(8, (tb // 2) // 8 * 8)
    return tb


def ncf_kernel(user_ref, item_ref,            # SMEM scalar prefetch: (B_pad,) int32
               u_tab, i_tab,                  # HBM (pl.ANY): (V, 128) f32 packed tables
               w1u, w1i, t1, w2, t2, w3, t3, w4, t4, wfg, wfm, bf,
               out_ref,                       # (TB, NPAD) f32
               ubuf, ibuf, sem):              # VMEM gather scratch + DMA semaphores
    tb = ubuf.shape[0]
    base = pl.program_id(0) * tb

    # ---- fused embedding gather: 2 row-DMAs per example, all in flight at once.
    @pl.loop(0, tb)
    def _(r):
        uid = user_ref[base + r]
        iid = item_ref[base + r]
        pltpu.make_async_copy(u_tab.at[uid], ubuf.at[r], sem.at[0]).start()
        pltpu.make_async_copy(i_tab.at[iid], ibuf.at[r], sem.at[1]).start()

    @pl.loop(0, tb)
    def _(r):
        uid = user_ref[base + r]
        iid = item_ref[base + r]
        pltpu.make_async_copy(u_tab.at[uid], ubuf.at[r], sem.at[0]).wait()
        pltpu.make_async_copy(i_tab.at[iid], ibuf.at[r], sem.at[1]).wait()

    u = ubuf[...]                              # (TB, 128) f32  [gmf | mlp]
    i = ibuf[...]
    u16 = u.astype(jnp.bfloat16)               # bf16 MXU operands, f32 accumulate
    i16 = i.astype(jnp.bfloat16)

    # Layer 1: concat([u_mlp, i_mlp]) @ W1 == u @ W1u_big + i @ W1i_big, where the
    # GMF rows [0:64] of W1*_big are zero -> no lane slicing of the packed rows.
    x = (jnp.dot(u16, w1u[...], preferred_element_type=jnp.float32)
         + jnp.dot(i16, w1i[...], preferred_element_type=jnp.float32)
         + t1[...])
    x = jnp.maximum(x, 0.0)                    # ReLU (Dropout = identity in eval)

    for w, t in ((w2, t2), (w3, t3), (w4, t4)):    # BatchNorm folded into (w, t)
        x = jnp.dot(x.astype(jnp.bfloat16), w[...],
                    preferred_element_type=jnp.float32) + t[...]
        x = jnp.maximum(x, 0.0)

    # GMF interaction in f32; the mlp lanes of the product hit zero rows of wf_gmf
    # so they contribute exactly 0.
    gmf = (u * i).astype(jnp.bfloat16)

    logits = (jnp.dot(gmf, wfg[...], preferred_element_type=jnp.float32)
              + jnp.dot(x.astype(jnp.bfloat16), wfm[...],
                        preferred_element_type=jnp.float32)
              + bf[...])                       # (TB, 8); pad cols biased -1e30 (f32)

    m = jnp.max(logits, axis=-1, keepdims=True)
    e = jnp.exp(logits - m)                    # pad cols -> exp(-huge) == 0 exactly
    inv = pl.reciprocal(jnp.sum(e, axis=-1, keepdims=True), approx=True)   # EUP slot
    out_ref[...] = e * inv                     # (TB, 8) store


def make_params(key, num_users, num_items):
    """Raw (unfolded) parameters, PyTorch-module style (eval-mode BN state)."""
    nk = iter(jax.random.split(key, 32))
    p = {}
    p["ue_gmf"] = jax.random.normal(next(nk), (num_users, EMB), jnp.float32)
    p["ie_gmf"] = jax.random.normal(next(nk), (num_items, EMB), jnp.float32)
    p["ue_mlp"] = jax.random.normal(next(nk), (num_users, EMB), jnp.float32)
    p["ie_mlp"] = jax.random.normal(next(nk), (num_items, EMB), jnp.float32)

    in_dim = EMB * 2
    for i, out_dim in enumerate(MLP_DIMS, start=1):
        limit = (6.0 / (in_dim + out_dim)) ** 0.5
        p[f"w{i}"] = jax.random.uniform(next(nk), (in_dim, out_dim), jnp.float32,
                                        -limit, limit)
        p[f"b{i}"] = 0.05 * jax.random.normal(next(nk), (1, out_dim), jnp.float32)
        # Non-trivial BatchNorm1d eval-mode state so the BN->weight fold is exercised.
        p[f"gamma{i}"] = 1.0 + 0.1 * jax.random.normal(next(nk), (1, out_dim), jnp.float32)
        p[f"beta{i}"] = 0.1 * jax.random.normal(next(nk), (1, out_dim), jnp.float32)
        p[f"mean{i}"] = 0.1 * jax.random.normal(next(nk), (1, out_dim), jnp.float32)
        p[f"var{i}"] = 1.0 + jax.random.uniform(next(nk), (1, out_dim), jnp.float32)
        in_dim = out_dim

    fin = EMB + MLP_DIMS[-1]
    std = (2.0 / (fin + NUM_CLASSES)) ** 0.5
    p["wf"] = std * jax.random.normal(next(nk), (fin, NUM_CLASSES), jnp.float32)
    p["bf"] = 0.05 * jax.random.normal(next(nk), (1, NUM_CLASSES), jnp.float32)
    return p


def fold_params(p):
    """Fold BN(eval)+bias into weights, cast dot operands to bf16, pack tables."""
    kp = {}
    for i in range(1, 5):
        scale = p[f"gamma{i}"] / jnp.sqrt(p[f"var{i}"] + BN_EPS)     # (1, d)
        shift = p[f"beta{i}"] - p[f"mean{i}"] * scale
        w = p[f"w{i}"] * scale                                       # column-scale
        t = p[f"b{i}"] * scale + shift
        if i == 1:
            # Lift the two K=64 halves of W1 into (128, 128) operands whose GMF rows
            # are zero, matching the packed [gmf | mlp] embedding rows.
            w1u = jnp.zeros((PACK, MLP_DIMS[0]), jnp.float32).at[EMB:].set(w[:EMB])
            w1i = jnp.zeros((PACK, MLP_DIMS[0]), jnp.float32).at[EMB:].set(w[EMB:])
            kp["w1u"] = w1u.astype(jnp.bfloat16)
            kp["w1i"] = w1i.astype(jnp.bfloat16)
        else:
            kp[f"w{i}"] = w.astype(jnp.bfloat16)
        kp[f"t{i}"] = t                                              # f32 (1, d)

    wf = p["wf"]                                                     # (80, 5)
    wf_g = jnp.zeros((PACK, NPAD), jnp.float32).at[:EMB, :NUM_CLASSES].set(wf[:EMB])
    wf_m = jnp.zeros((MLP_DIMS[-1], NPAD), jnp.float32).at[:, :NUM_CLASSES].set(wf[EMB:])
    kp["wf_gmf"] = wf_g.astype(jnp.bfloat16)
    kp["wf_mlp"] = wf_m.astype(jnp.bfloat16)
    # Padded logit columns get a huge negative bias (kept in f32 -> exact softmax).
    kp["bf"] = jnp.full((1, NPAD), -1e30, jnp.float32).at[:, :NUM_CLASSES].set(p["bf"])

    # Packed embedding tables (f32 rows so a single-row gather DMA stays on plain
    # 1-sublane granularity): row = [gmf_emb | mlp_emb].
    kp["u_table"] = jnp.concatenate([p["ue_gmf"], p["ue_mlp"]], axis=-1)
    kp["i_table"] = jnp.concatenate([p["ie_gmf"], p["ie_mlp"]], axis=-1)
    return kp


def ncf_forward(kparams, user, item, *, tb_max=2048):
    B = user.shape[0]
    TB = _choose_tb(B, tb_max)
    B_pad = _round_up(B, TB)
    user_p = jnp.pad(user.astype(jnp.int32), (0, B_pad - B))   # pad rows gather row 0
    item_p = jnp.pad(item.astype(jnp.int32), (0, B_pad - B))

    weight_names = ["w1u", "w1i", "t1", "w2", "t2", "w3", "t3", "w4", "t4",
                    "wf_gmf", "wf_mlp", "bf"]
    weights = [kparams[n] for n in weight_names]

    def resident(a):     # constant index_map + full-array block -> VMEM-resident
        return pl.BlockSpec(a.shape, lambda i, *_: (0,) * a.ndim)

    grid_spec = pltpu.PrefetchScalarGridSpec(
        num_scalar_prefetch=2,                         # user / item indices -> SMEM
        grid=(B_pad // TB,),
        in_specs=[pl.BlockSpec(memory_space=pl.ANY),   # packed user table (HBM)
                  pl.BlockSpec(memory_space=pl.ANY)]   # packed item table (HBM)
                 + [resident(w) for w in weights],
        out_specs=pl.BlockSpec((TB, NPAD), lambda i, *_: (i, 0)),
        scratch_shapes=[pltpu.VMEM((TB, PACK), jnp.float32),   # gathered user rows
                        pltpu.VMEM((TB, PACK), jnp.float32),   # gathered item rows
                        pltpu.SemaphoreType.DMA((2,))],
    )

    out = pl.pallas_call(
        ncf_kernel,
        out_shape=jax.ShapeDtypeStruct((B_pad, NPAD), jnp.float32),
        grid_spec=grid_spec,
        compiler_params=pltpu.CompilerParams(
            dimension_semantics=("parallel",),
            vmem_limit_bytes=32 * 1024 * 1024),
    )(user_p, item_p, kparams["u_table"], kparams["i_table"], *weights)

    # NOTE: a real consumer should take the padded (B_pad, 8) slab and fuse this
    # slice; kept here to preserve the module's (B, 5) output contract.
    return out[:B, :NUM_CLASSES]


def ncf_reference(p, user, item):
    """Pure-JAX f32 reference (unfolded params, explicit BN eval math)."""
    gmf = p["ue_gmf"][user] * p["ie_gmf"][item]
    x = jnp.concatenate([p["ue_mlp"][user], p["ie_mlp"][item]], axis=-1)
    for i in range(1, 5):
        x = x @ p[f"w{i}"] + p[f"b{i}"]
        x = (x - p[f"mean{i}"]) / jnp.sqrt(p[f"var{i}"] + BN_EPS) * p[f"gamma{i}"] \
            + p[f"beta{i}"]
        x = jnp.maximum(x, 0.0)
    logits = jnp.concatenate([gmf, x], axis=-1) @ p["wf"] + p["bf"]
    return jax.nn.softmax(logits, axis=-1)


if __name__ == "__main__":
    num_users, num_items, batch = 50, 60, 20
    key = jax.random.PRNGKey(0)
    k_params, k_user, k_item = jax.random.split(key, 3)

    params = make_params(k_params, num_users, num_items)
    kparams = fold_params(params)
    user = jax.random.randint(k_user, (batch,), 0, num_users, dtype=jnp.int32)
    item = jax.random.randint(k_item, (batch,), 0, num_items, dtype=jnp.int32)

    # tb_max=8 at this tiny batch exercises a multi-step grid (3 tiles) + tail padding
    # of the scalar-prefetched index arrays.
    out = ncf_forward(kparams, user, item, tb_max=8)
    out = jax.block_until_ready(out)

    ref = ncf_reference(params, user, item)
    assert out.shape == (batch, NUM_CLASSES)
    assert bool(jnp.all(jnp.isfinite(out)))
    # bf16 matmul operands + approx reciprocal => bf16-level tolerance vs. f32 ref.
    max_err = float(jnp.max(jnp.abs(out - ref)))
    assert jnp.allclose(out, ref, atol=3e-2, rtol=0.0), f"max_err={max_err}"
    assert jnp.allclose(jnp.sum(out, axis=-1), 1.0, atol=5e-3)

    print("KERNEL_OK")
</pallas_src>

<mosaic_0001>
module attributes {stable_mosaic.version = 11 : i64} {
  func.func @ncf_kernel(%arg0: i32, %arg1: memref<24xi32, #tpu.memory_space<smem>>, %arg2: memref<24xi32, #tpu.memory_space<smem>>, %arg3: memref<50x128xf32, #tpu.memory_space<any>>, %arg4: memref<60x128xf32, #tpu.memory_space<any>>, %arg5: memref<128x128xbf16, #tpu.memory_space<vmem>>, %arg6: memref<128x128xbf16, #tpu.memory_space<vmem>>, %arg7: memref<1x128xf32, #tpu.memory_space<vmem>>, %arg8: memref<128x64xbf16, #tpu.memory_space<vmem>>, %arg9: memref<1x64xf32, #tpu.memory_space<vmem>>, %arg10: memref<64x32xbf16, #tpu.memory_space<vmem>>, %arg11: memref<1x32xf32, #tpu.memory_space<vmem>>, %arg12: memref<32x16xbf16, #tpu.memory_space<vmem>>, %arg13: memref<1x16xf32, #tpu.memory_space<vmem>>, %arg14: memref<128x8xbf16, #tpu.memory_space<vmem>>, %arg15: memref<16x8xbf16, #tpu.memory_space<vmem>>, %arg16: memref<1x8xf32, #tpu.memory_space<vmem>>, %arg17: memref<8x8xf32, #tpu.memory_space<vmem>>, %arg18: memref<8x128xf32, #tpu.memory_space<vmem>>, %arg19: memref<8x128xf32, #tpu.memory_space<vmem>>, %arg20: memref<2x!tpu.dma_semaphore, #tpu.memory_space<semaphore_mem>>) attributes {dimension_semantics = [#tpu.dimension_semantics<parallel>], iteration_bounds = array<i64: 3>, scalar_prefetch = 2 : i64, scratch_operands = 3 : i64, tpu.core_type = #tpu.core_type<tc>, window_params = [{}, {}, {pipeline_mode = #tpu.pipeline_mode<synchronous>, transform_indices = @transform_2, window_bounds = array<i64: 128, 128>}, {pipeline_mode = #tpu.pipeline_mode<synchronous>, transform_indices = @transform_3, window_bounds = array<i64: 128, 128>}, {pipeline_mode = #tpu.pipeline_mode<synchronous>, transform_indices = @transform_4, window_bounds = array<i64: 1, 128>}, {pipeline_mode = #tpu.pipeline_mode<synchronous>, transform_indices = @transform_5, window_bounds = array<i64: 128, 64>}, {pipeline_mode = #tpu.pipeline_mode<synchronous>, transform_indices = @transform_6, window_bounds = array<i64: 1, 64>}, {pipeline_mode = #tpu.pipeline_mode<synchronous>, transform_indices = @transform_7, window_bounds = array<i64: 64, 32>}, {pipeline_mode = #tpu.pipeline_mode<synchronous>, transform_indices = @transform_8, window_bounds = array<i64: 1, 32>}, {pipeline_mode = #tpu.pipeline_mode<synchronous>, transform_indices = @transform_9, window_bounds = array<i64: 32, 16>}, {pipeline_mode = #tpu.pipeline_mode<synchronous>, transform_indices = @transform_10, window_bounds = array<i64: 1, 16>}, {pipeline_mode = #tpu.pipeline_mode<synchronous>, transform_indices = @transform_11, window_bounds = array<i64: 128, 8>}, {pipeline_mode = #tpu.pipeline_mode<synchronous>, transform_indices = @transform_12, window_bounds = array<i64: 16, 8>}, {pipeline_mode = #tpu.pipeline_mode<synchronous>, transform_indices = @transform_13, window_bounds = array<i64: 1, 8>}, {transform_indices = @transform_14, window_bounds = array<i64: 8, 8>}]} {
    %c8_i32 = arith.constant 8 : i32
    %0 = arith.muli %arg0, %c8_i32 : i32
    %c0_i32 = arith.constant 0 : i32
    %c8_i32_0 = arith.constant 8 : i32
    %1 = arith.addi %c0_i32, %c8_i32_0 : i32
    %c1_i32 = arith.constant 1 : i32
    scf.for %arg21 = %c0_i32 to %1 step %c1_i32  : i32 {
      %c1_i32_47 = arith.constant 1 : i32
      %63 = arith.muli %arg21, %c1_i32_47 : i32
      %c0_i32_48 = arith.constant 0 : i32
      %64 = arith.addi %c0_i32_48, %63 : i32
      %65 = arith.addi %0, %64 : i32
      %66 = arith.index_cast %65 : i32 to index
      %67 = memref.load %arg1[%66] : memref<24xi32, #tpu.memory_space<smem>>
      %68 = arith.addi %0, %64 : i32
      %69 = arith.index_cast %68 : i32 to index
      %70 = memref.load %arg2[%69] : memref<24xi32, #tpu.memory_space<smem>>
      %c0_i32_49 = arith.constant 0 : i32
      %c0_i32_50 = arith.constant 0 : i32
      %71 = tpu.memref_slice %arg3[%67, %c0_i32_50] : memref<50x128xf32, #tpu.memory_space<any>> -> memref<1x128xf32, #tpu.memory_space<any>>
      %72 = tpu.memref_squeeze %71 : memref<1x128xf32, #tpu.memory_space<any>> -> memref<128xf32, #tpu.memory_space<any>>
      %c0_i32_51 = arith.constant 0 : i32
      %73 = tpu.memref_slice %arg18[%64, %c0_i32_51] : memref<8x128xf32, #tpu.memory_space<vmem>> -> memref<1x128xf32, #tpu.memory_space<vmem>>
      %74 = tpu.memref_squeeze %73 : memref<1x128xf32, #tpu.memory_space<vmem>> -> memref<128xf32, #tpu.memory_space<vmem>>
      %75 = tpu.memref_slice %arg20[%c0_i32_49] : memref<2x!tpu.dma_semaphore, #tpu.memory_space<semaphore_mem>> -> memref<1x!tpu.dma_semaphore, #tpu.memory_space<semaphore_mem>>
      %76 = tpu.memref_squeeze %75 : memref<1x!tpu.dma_semaphore, #tpu.memory_space<semaphore_mem>> -> memref<!tpu.dma_semaphore, #tpu.memory_space<semaphore_mem>>
      tpu.enqueue_dma source(%72 : memref<128xf32, #tpu.memory_space<any>>) target(%74 : memref<128xf32, #tpu.memory_space<vmem>>) target_semaphore(%76 : memref<!tpu.dma_semaphore, #tpu.memory_space<semaphore_mem>>)
      %c1_i32_52 = arith.constant 1 : i32
      %c0_i32_53 = arith.constant 0 : i32
      %77 = tpu.memref_slice %arg4[%70, %c0_i32_53] : memref<60x128xf32, #tpu.memory_space<any>> -> memref<1x128xf32, #tpu.memory_space<any>>
      %78 = tpu.memref_squeeze %77 : memref<1x128xf32, #tpu.memory_space<any>> -> memref<128xf32, #tpu.memory_space<any>>
      %c0_i32_54 = arith.constant 0 : i32
      %79 = tpu.memref_slice %arg19[%64, %c0_i32_54] : memref<8x128xf32, #tpu.memory_space<vmem>> -> memref<1x128xf32, #tpu.memory_space<vmem>>
      %80 = tpu.memref_squeeze %79 : memref<1x128xf32, #tpu.memory_space<vmem>> -> memref<128xf32, #tpu.memory_space<vmem>>
      %81 = tpu.memref_slice %arg20[%c1_i32_52] : memref<2x!tpu.dma_semaphore, #tpu.memory_space<semaphore_mem>> -> memref<1x!tpu.dma_semaphore, #tpu.memory_space<semaphore_mem>>
      %82 = tpu.memref_squeeze %81 : memref<1x!tpu.dma_semaphore, #tpu.memory_space<semaphore_mem>> -> memref<!tpu.dma_semaphore, #tpu.memory_space<semaphore_mem>>
      tpu.enqueue_dma source(%78 : memref<128xf32, #tpu.memory_space<any>>) target(%80 : memref<128xf32, #tpu.memory_space<vmem>>) target_semaphore(%82 : memref<!tpu.dma_semaphore, #tpu.memory_space<semaphore_mem>>)
    }
    %c8_i32_1 = arith.constant 8 : i32
    %c0_i32_2 = arith.constant 0 : i32
    %c8_i32_3 = arith.constant 8 : i32
    %2 = arith.addi %c0_i32_2, %c8_i32_3 : i32
    %c1_i32_4 = arith.constant 1 : i32
    scf.for %arg21 = %c0_i32_2 to %2 step %c1_i32_4  : i32 {
      %c1_i32_47 = arith.constant 1 : i32
      %63 = arith.muli %arg21, %c1_i32_47 : i32
      %c0_i32_48 = arith.constant 0 : i32
      %64 = arith.addi %c0_i32_48, %63 : i32
      %65 = arith.addi %0, %64 : i32
      %66 = arith.index_cast %65 : i32 to index
      %67 = memref.load %arg1[%66] : memref<24xi32, #tpu.memory_space<smem>>
      %68 = arith.addi %0, %64 : i32
      %69 = arith.index_cast %68 : i32 to index
      %70 = memref.load %arg2[%69] : memref<24xi32, #tpu.memory_space<smem>>
      %c0_i32_49 = arith.constant 0 : i32
      %c0_i32_50 = arith.constant 0 : i32
      %71 = tpu.memref_slice %arg3[%67, %c0_i32_50] : memref<50x128xf32, #tpu.memory_space<any>> -> memref<1x128xf32, #tpu.memory_space<any>>
      %72 = tpu.memref_squeeze %71 : memref<1x128xf32, #tpu.memory_space<any>> -> memref<128xf32, #tpu.memory_space<any>>
      %c0_i32_51 = arith.constant 0 : i32
      %73 = tpu.memref_slice %arg18[%64, %c0_i32_51] : memref<8x128xf32, #tpu.memory_space<vmem>> -> memref<1x128xf32, #tpu.memory_space<vmem>>
      %74 = tpu.memref_squeeze %73 : memref<1x128xf32, #tpu.memory_space<vmem>> -> memref<128xf32, #tpu.memory_space<vmem>>
      %75 = tpu.memref_slice %arg20[%c0_i32_49] : memref<2x!tpu.dma_semaphore, #tpu.memory_space<semaphore_mem>> -> memref<1x!tpu.dma_semaphore, #tpu.memory_space<semaphore_mem>>
      %76 = tpu.memref_squeeze %75 : memref<1x!tpu.dma_semaphore, #tpu.memory_space<semaphore_mem>> -> memref<!tpu.dma_semaphore, #tpu.memory_space<semaphore_mem>>
      tpu.wait_dma2 semaphore(%76 : memref<!tpu.dma_semaphore, #tpu.memory_space<semaphore_mem>>) src(%72 : memref<128xf32, #tpu.memory_space<any>>) dst(%74 : memref<128xf32, #tpu.memory_space<vmem>>)
      %c1_i32_52 = arith.constant 1 : i32
      %c0_i32_53 = arith.constant 0 : i32
      %77 = tpu.memref_slice %arg4[%70, %c0_i32_53] : memref<60x128xf32, #tpu.memory_space<any>> -> memref<1x128xf32, #tpu.memory_space<any>>
      %78 = tpu.memref_squeeze %77 : memref<1x128xf32, #tpu.memory_space<any>> -> memref<128xf32, #tpu.memory_space<any>>
      %c0_i32_54 = arith.constant 0 : i32
      %79 = tpu.memref_slice %arg19[%64, %c0_i32_54] : memref<8x128xf32, #tpu.memory_space<vmem>> -> memref<1x128xf32, #tpu.memory_space<vmem>>
      %80 = tpu.memref_squeeze %79 : memref<1x128xf32, #tpu.memory_space<vmem>> -> memref<128xf32, #tpu.memory_space<vmem>>
      %81 = tpu.memref_slice %arg20[%c1_i32_52] : memref<2x!tpu.dma_semaphore, #tpu.memory_space<semaphore_mem>> -> memref<1x!tpu.dma_semaphore, #tpu.memory_space<semaphore_mem>>
      %82 = tpu.memref_squeeze %81 : memref<1x!tpu.dma_semaphore, #tpu.memory_space<semaphore_mem>> -> memref<!tpu.dma_semaphore, #tpu.memory_space<semaphore_mem>>
      tpu.wait_dma2 semaphore(%82 : memref<!tpu.dma_semaphore, #tpu.memory_space<semaphore_mem>>) src(%78 : memref<128xf32, #tpu.memory_space<any>>) dst(%80 : memref<128xf32, #tpu.memory_space<vmem>>)
    }
    %c8_i32_5 = arith.constant 8 : i32
    %c0 = arith.constant 0 : index
    %c0_6 = arith.constant 0 : index
    %3 = vector.load %arg18[%c0, %c0_6] : memref<8x128xf32, #tpu.memory_space<vmem>>, vector<8x128xf32>
    %c0_7 = arith.constant 0 : index
    %c0_8 = arith.constant 0 : index
    %4 = vector.load %arg19[%c0_7, %c0_8] : memref<8x128xf32, #tpu.memory_space<vmem>>, vector<8x128xf32>
    %5 = arith.truncf %3 : vector<8x128xf32> to vector<8x128xbf16>
    %6 = arith.truncf %4 : vector<8x128xf32> to vector<8x128xbf16>
    %c0_9 = arith.constant 0 : index
    %c0_10 = arith.constant 0 : index
    %7 = vector.load %arg5[%c0_9, %c0_10] : memref<128x128xbf16, #tpu.memory_space<vmem>>, vector<128x128xbf16>
    %cst = arith.constant dense<0.000000e+00> : vector<8x128xf32>
    %8 = tpu.matmul %5, %7, %cst {dimension_numbers = #tpu.dot_dimension_numbers<[1], [0], [0], [1], [0, 0, 1, 1], [], []>} : vector<8x128xbf16>, vector<128x128xbf16>, vector<8x128xf32> -> vector<8x128xf32>
    %c0_11 = arith.constant 0 : index
    %c0_12 = arith.constant 0 : index
    %9 = vector.load %arg6[%c0_11, %c0_12] : memref<128x128xbf16, #tpu.memory_space<vmem>>, vector<128x128xbf16>
    %cst_13 = arith.constant dense<0.000000e+00> : vector<8x128xf32>
    %10 = tpu.matmul %6, %9, %cst_13 {dimension_numbers = #tpu.dot_dimension_numbers<[1], [0], [0], [1], [0, 0, 1, 1], [], []>} : vector<8x128xbf16>, vector<128x128xbf16>, vector<8x128xf32> -> vector<8x128xf32>
    %11 = arith.addf %8, %10 : vector<8x128xf32>
    %c0_14 = arith.constant 0 : index
    %c0_15 = arith.constant 0 : index
    %12 = vector.load %arg7[%c0_14, %c0_15] : memref<1x128xf32, #tpu.memory_space<vmem>>, vector<1x128xf32>
    %13 = vector.broadcast %12 : vector<1x128xf32> to vector<8x128xf32>
    %14 = arith.addf %11, %13 : vector<8x128xf32>
    %cst_16 = arith.constant 0.000000e+00 : f32
    %15 = vector.broadcast %cst_16 : f32 to vector<8x128xf32>
    %16 = arith.maximumf %14, %15 : vector<8x128xf32>
    %17 = arith.truncf %16 : vector<8x128xf32> to vector<8x128xbf16>
    %c0_17 = arith.constant 0 : index
    %c0_18 = arith.constant 0 : index
    %18 = vector.load %arg8[%c0_17, %c0_18] : memref<128x64xbf16, #tpu.memory_space<vmem>>, vector<128x64xbf16>
    %cst_19 = arith.constant dense<0.000000e+00> : vector<8x64xf32>
    %19 = tpu.matmul %17, %18, %cst_19 {dimension_numbers = #tpu.dot_dimension_numbers<[1], [0], [0], [1], [0, 0, 1, 1], [], []>} : vector<8x128xbf16>, vector<128x64xbf16>, vector<8x64xf32> -> vector<8x64xf32>
    %c0_20 = arith.constant 0 : index
    %c0_21 = arith.constant 0 : index
    %20 = vector.load %arg9[%c0_20, %c0_21] : memref<1x64xf32, #tpu.memory_space<vmem>>, vector<1x64xf32>
    %21 = vector.broadcast %20 : vector<1x64xf32> to vector<8x64xf32>
    %22 = arith.addf %19, %21 : vector<8x64xf32>
    %cst_22 = arith.constant 0.000000e+00 : f32
    %23 = vector.broadcast %cst_22 : f32 to vector<8x64xf32>
    %24 = arith.maximumf %22, %23 : vector<8x64xf32>
    %25 = arith.truncf %24 : vector<8x64xf32> to vector<8x64xbf16>
    %c0_23 = arith.constant 0 : index
    %c0_24 = arith.constant 0 : index
    %26 = vector.load %arg10[%c0_23, %c0_24] : memref<64x32xbf16, #tpu.memory_space<vmem>>, vector<64x32xbf16>
    %cst_25 = arith.constant dense<0.000000e+00> : vector<8x32xf32>
    %27 = tpu.matmul %25, %26, %cst_25 {dimension_numbers = #tpu.dot_dimension_numbers<[1], [0], [0], [1], [0, 0, 1, 1], [], []>} : vector<8x64xbf16>, vector<64x32xbf16>, vector<8x32xf32> -> vector<8x32xf32>
    %c0_26 = arith.constant 0 : index
    %c0_27 = arith.constant 0 : index
    %28 = vector.load %arg11[%c0_26, %c0_27] : memref<1x32xf32, #tpu.memory_space<vmem>>, vector<1x32xf32>
    %29 = vector.broadcast %28 : vector<1x32xf32> to vector<8x32xf32>
    %30 = arith.addf %27, %29 : vector<8x32xf32>
    %cst_28 = arith.constant 0.000000e+00 : f32
    %31 = vector.broadcast %cst_28 : f32 to vector<8x32xf32>
    %32 = arith.maximumf %30, %31 : vector<8x32xf32>
    %33 = arith.truncf %32 : vector<8x32xf32> to vector<8x32xbf16>
    %c0_29 = arith.constant 0 : index
    %c0_30 = arith.constant 0 : index
    %34 = vector.load %arg12[%c0_29, %c0_30] : memref<32x16xbf16, #tpu.memory_space<vmem>>, vector<32x16xbf16>
    %cst_31 = arith.constant dense<0.000000e+00> : vector<8x16xf32>
    %35 = tpu.matmul %33, %34, %cst_31 {dimension_numbers = #tpu.dot_dimension_numbers<[1], [0], [0], [1], [0, 0, 1, 1], [], []>} : vector<8x32xbf16>, vector<32x16xbf16>, vector<8x16xf32> -> vector<8x16xf32>
    %c0_32 = arith.constant 0 : index
    %c0_33 = arith.constant 0 : index
    %36 = vector.load %arg13[%c0_32, %c0_33] : memref<1x16xf32, #tpu.memory_space<vmem>>, vector<1x16xf32>
    %37 = vector.broadcast %36 : vector<1x16xf32> to vector<8x16xf32>
    %38 = arith.addf %35, %37 : vector<8x16xf32>
    %cst_34 = arith.constant 0.000000e+00 : f32
    %39 = vector.broadcast %cst_34 : f32 to vector<8x16xf32>
    %40 = arith.maximumf %38, %39 : vector<8x16xf32>
    %41 = arith.mulf %3, %4 : vector<8x128xf32>
    %42 = arith.truncf %41 : vector<8x128xf32> to vector<8x128xbf16>
    %c0_35 = arith.constant 0 : index
    %c0_36 = arith.constant 0 : index
    %43 = vector.load %arg14[%c0_35, %c0_36] : memref<128x8xbf16, #tpu.memory_space<vmem>>, vector<128x8xbf16>
    %cst_37 = arith.constant dense<0.000000e+00> : vector<8x8xf32>
    %44 = tpu.matmul %42, %43, %cst_37 {dimension_numbers = #tpu.dot_dimension_numbers<[1], [0], [0], [1], [0, 0, 1, 1], [], []>} : vector<8x128xbf16>, vector<128x8xbf16>, vector<8x8xf32> -> vector<8x8xf32>
    %45 = arith.truncf %40 : vector<8x16xf32> to vector<8x16xbf16>
    %c0_38 = arith.constant 0 : index
    %c0_39 = arith.constant 0 : index
    %46 = vector.load %arg15[%c0_38, %c0_39] : memref<16x8xbf16, #tpu.memory_space<vmem>>, vector<16x8xbf16>
    %cst_40 = arith.constant dense<0.000000e+00> : vector<8x8xf32>
    %47 = tpu.matmul %45, %46, %cst_40 {dimension_numbers = #tpu.dot_dimension_numbers<[1], [0], [0], [1], [0, 0, 1, 1], [], []>} : vector<8x16xbf16>, vector<16x8xbf16>, vector<8x8xf32> -> vector<8x8xf32>
    %48 = arith.addf %44, %47 : vector<8x8xf32>
    %c0_41 = arith.constant 0 : index
    %c0_42 = arith.constant 0 : index
    %49 = vector.load %arg16[%c0_41, %c0_42] : memref<1x8xf32, #tpu.memory_space<vmem>>, vector<1x8xf32>
    %50 = vector.broadcast %49 : vector<1x8xf32> to vector<8x8xf32>
    %51 = arith.addf %48, %50 : vector<8x8xf32>
    %cst_43 = arith.constant dense<0xFF800000> : vector<8xf32>
    %52 = vector.multi_reduction <maximumf>, %51, %cst_43 [1] : vector<8x8xf32> to vector<8xf32>
    %53 = vector.shape_cast %52 : vector<8xf32> to vector<8x1xf32>
    %54 = vector.broadcast %53 : vector<8x1xf32> to vector<8x8xf32>
    %55 = arith.subf %51, %54 : vector<8x8xf32>
    %56 = math.exp %55 : vector<8x8xf32>
    %cst_44 = arith.constant dense<0.000000e+00> : vector<8xf32>
    %57 = vector.multi_reduction <add>, %56, %cst_44 [1] : vector<8x8xf32> to vector<8xf32>
    %58 = vector.shape_cast %57 : vector<8xf32> to vector<8x1xf32>
    %59 = tpu.reciprocal %58 {approx = true} : vector<8x1xf32> -> vector<8x1xf32>
    %60 = vector.broadcast %59 : vector<8x1xf32> to vector<8x8xf32>
    %61 = arith.mulf %56, %60 : vector<8x8xf32>
    %c0_45 = arith.constant 0 : index
    %c0_46 = arith.constant 0 : index
    %62 = vector.load %arg17[%c0_45, %c0_46] : memref<8x8xf32, #tpu.memory_space<vmem>>, vector<8x8xf32>
    tpu.vector_store %arg17[%c0_45, %c0_46], %61 {strides = array<i32>} : memref<8x8xf32, #tpu.memory_space<vmem>>, vector<8x8xf32>,
    return
  }
  func.func @transform_2(%arg0: i32, %arg1: memref<24xi32, #tpu.memory_space<smem>>, %arg2: memref<24xi32, #tpu.memory_space<smem>>) -> (i32, i32) {
    %c0_i32 = arith.constant 0 : i32
    %c0_i32_0 = arith.constant 0 : i32
    %c0_i32_1 = arith.constant 0 : i32
    return %c0_i32, %c0_i32_0 : i32, i32
  }
  func.func @transform_3(%arg0: i32, %arg1: memref<24xi32, #tpu.memory_space<smem>>, %arg2: memref<24xi32, #tpu.memory_space<smem>>) -> (i32, i32) {
    %c0_i32 = arith.constant 0 : i32
    %c0_i32_0 = arith.constant 0 : i32
    %c0_i32_1 = arith.constant 0 : i32
    return %c0_i32, %c0_i32_0 : i32, i32
  }
  func.func @transform_4(%arg0: i32, %arg1: memref<24xi32, #tpu.memory_space<smem>>, %arg2: memref<24xi32, #tpu.memory_space<smem>>) -> (i32, i32) {
    %c0_i32 = arith.constant 0 : i32
    %c0_i32_0 = arith.constant 0 : i32
    %c0_i32_1 = arith.constant 0 : i32
    return %c0_i32, %c0_i32_0 : i32, i32
  }
  func.func @transform_5(%arg0: i32, %arg1: memref<24xi32, #tpu.memory_space<smem>>, %arg2: memref<24xi32, #tpu.memory_space<smem>>) -> (i32, i32) {
    %c0_i32 = arith.constant 0 : i32
    %c0_i32_0 = arith.constant 0 : i32
    %c0_i32_1 = arith.constant 0 : i32
    return %c0_i32, %c0_i32_0 : i32, i32
  }
  func.func @transform_6(%arg0: i32, %arg1: memref<24xi32, #tpu.memory_space<smem>>, %arg2: memref<24xi32, #tpu.memory_space<smem>>) -> (i32, i32) {
    %c0_i32 = arith.constant 0 : i32
    %c0_i32_0 = arith.constant 0 : i32
    %c0_i32_1 = arith.constant 0 : i32
    return %c0_i32, %c0_i32_0 : i32, i32
  }
  func.func @transform_7(%arg0: i32, %arg1: memref<24xi32, #tpu.memory_space<smem>>, %arg2: memref<24xi32, #tpu.memory_space<smem>>) -> (i32, i32) {
    %c0_i32 = arith.constant 0 : i32
    %c0_i32_0 = arith.constant 0 : i32
    %c0_i32_1 = arith.constant 0 : i32
    return %c0_i32, %c0_i32_0 : i32, i32
  }
  func.func @transform_8(%arg0: i32, %arg1: memref<24xi32, #tpu.memory_space<smem>>, %arg2: memref<24xi32, #tpu.memory_space<smem>>) -> (i32, i32) {
    %c0_i32 = arith.constant 0 : i32
    %c0_i32_0 = arith.constant 0 : i32
    %c0_i32_1 = arith.constant 0 : i32
    return %c0_i32, %c0_i32_0 : i32, i32
  }
  func.func @transform_9(%arg0: i32, %arg1: memref<24xi32, #tpu.memory_space<smem>>, %arg2: memref<24xi32, #tpu.memory_space<smem>>) -> (i32, i32) {
    %c0_i32 = arith.constant 0 : i32
    %c0_i32_0 = arith.constant 0 : i32
    %c0_i32_1 = arith.constant 0 : i32
    return %c0_i32, %c0_i32_0 : i32, i32
  }
  func.func @transform_10(%arg0: i32, %arg1: memref<24xi32, #tpu.memory_space<smem>>, %arg2: memref<24xi32, #tpu.memory_space<smem>>) -> (i32, i32) {
    %c0_i32 = arith.constant 0 : i32
    %c0_i32_0 = arith.constant 0 : i32
    %c0_i32_1 = arith.constant 0 : i32
    return %c0_i32, %c0_i32_0 : i32, i32
  }
  func.func @transform_11(%arg0: i32, %arg1: memref<24xi32, #tpu.memory_space<smem>>, %arg2: memref<24xi32, #tpu.memory_space<smem>>) -> (i32, i32) {
    %c0_i32 = arith.constant 0 : i32
    %c0_i32_0 = arith.constant 0 : i32
    %c0_i32_1 = arith.constant 0 : i32
    return %c0_i32, %c0_i32_0 : i32, i32
  }
  func.func @transform_12(%arg0: i32, %arg1: memref<24xi32, #tpu.memory_space<smem>>, %arg2: memref<24xi32, #tpu.memory_space<smem>>) -> (i32, i32) {
    %c0_i32 = arith.constant 0 : i32
    %c0_i32_0 = arith.constant 0 : i32
    %c0_i32_1 = arith.constant 0 : i32
    return %c0_i32, %c0_i32_0 : i32, i32
  }
  func.func @transform_13(%arg0: i32, %arg1: memref<24xi32, #tpu.memory_space<smem>>, %arg2: memref<24xi32, #tpu.memory_space<smem>>) -> (i32, i32) {
    %c0_i32 = arith.constant 0 : i32
    %c0_i32_0 = arith.constant 0 : i32
    %c0_i32_1 = arith.constant 0 : i32
    return %c0_i32, %c0_i32_0 : i32, i32
  }
  func.func @transform_14(%arg0: i32, %arg1: memref<24xi32, #tpu.memory_space<smem>>, %arg2: memref<24xi32, #tpu.memory_space<smem>>) -> (i32, i32) {
    %c0_i32 = arith.constant 0 : i32
    %c0_i32_0 = arith.constant 0 : i32
    return %arg0, %c0_i32 : i32, i32
  }
}

</mosaic_0001>

<llo_original>
// kernel: tpu_custom_call.1
$region0: #{tpu_custom_call.1}
  #allocation0 [shape = 'u32[]', space=smem, size = 0x4, offset = 0x4, fixed_abs, tag = 'smem constant byte address 0x4 - core index']
  #allocation1 [shape = 'u32[72,128]{1,0:T(1,128)}', space=vmem, size = 0x9000, scoped, tag = 'internal scratch']
  #allocation2 [shape = 'f32[8,128]{1,0:T(8,128)}', space=vmem, size = 0x1000, scoped, tag = 'scratch operand']
  #allocation3 [shape = 'f32[8,128]{1,0:T(8,128)}', space=vmem, size = 0x1000, scoped, tag = 'scratch operand']
  #allocation4 [shape = 's32[2]{0}', space=sflag, size = 0x8, scoped, tag = 'scratch operand']
  #allocation5 [shape = 's32[1]{0}', space=sflag, size = 0x4, scoped, tag = 'scoped memory for tpu_custom_call.1']
  #allocation6 [shape = 'u8[512]{0}', space=smem, size = 0x200, scoped, tag = 'prefetched SMEM operand 0']
  #allocation7 [shape = 'u8[512]{0}', space=smem, size = 0x200, scoped, tag = 'prefetched SMEM operand 1']
  #allocation10 [shape = 's32[]', space=sflag, size = 0x4, offset = 0, fixed_abs, tag = 'sflag constant byte address 0x0 - dummy sync flag']
  #allocation11 [shape = 's32[]', space=sflag, size = 0x4, offset = 0, fixed_abs, tag = 'sflag constant byte address 0x0 - dummy sync flag']
  %s0 = inlined_call_operand.vmem [shape: s32[24], index: 0, kind: input, shape index: {}]
  %s1 = inlined_call_operand.vmem [shape: s32[24], index: 1, kind: input, shape index: {}]
  %s2 = inlined_call_operand.vmem [shape: f32[50,128], index: 2, kind: input, shape index: {}]
  %s3 = inlined_call_operand.vmem [shape: f32[60,128], index: 3, kind: input, shape index: {}]
  %s4 = inlined_call_operand.vmem [shape: bf16[128,128], index: 4, kind: input, shape index: {}]
  %s5 = inlined_call_operand.hbm [shape: bf16[128,128], index: 5, kind: input, shape index: {}]
  %s6 = inlined_call_operand.vmem [shape: f32[1,128], index: 6, kind: input, shape index: {}]
  %s7 = inlined_call_operand.vmem [shape: bf16[128,64], index: 7, kind: input, shape index: {}]
  %s8 = inlined_call_operand.vmem [shape: f32[1,64], index: 8, kind: input, shape index: {}]
  %s9 = inlined_call_operand.vmem [shape: bf16[64,32], index: 9, kind: input, shape index: {}]
  %s10 = inlined_call_operand.vmem [shape: f32[1,32], index: 10, kind: input, shape index: {}]
  %s11 = inlined_call_operand.vmem [shape: bf16[32,16], index: 11, kind: input, shape index: {}]
  %s12 = inlined_call_operand.vmem [shape: f32[1,16], index: 12, kind: input, shape index: {}]
  %s13 = inlined_call_operand.vmem [shape: bf16[128,8], index: 13, kind: input, shape index: {}]
  %s14 = inlined_call_operand.vmem [shape: bf16[16,8], index: 14, kind: input, shape index: {}]
  %s15 = inlined_call_operand.vmem [shape: f32[1,8], index: 15, kind: input, shape index: {}]
  %s16 = inlined_call_operand.vmem [shape: f32[24,8], index: 16, kind: output, shape index: {}]
  %s17 = sld [smem:[#allocation0]]
  $region159: #{tpu_custom_call.1} parent=0
    _
  %s19 = ssub.s32 1, %s17
  %s20 = scalar_select 0, %s19, %s17
  %s22 = sshll.u32 %s0, 4
  %s23 = int_to_ptr.vmem [resolvable:$true] %s22
  %25 = dma.vmem_to_smem %s23, 16, [#allocation6], [#allocation5]
  %s27 = sshll.u32 %s1, 4
  %s28 = int_to_ptr.vmem [resolvable:$true] %s27
  %30 = dma.vmem_to_smem %s28, 16, [#allocation7], [#allocation5]
  %32 = dma.done [#allocation5], 32
  %33 = sfence
  $region1: #{tpu_custom_call.1} parent=0
    #allocation8 [shape = 'u8[32768]{0}', space=vmem, size = 0x8000, scoped, tag = 'input window, operand 5, single buffered']
    #allocation9 [shape = 's32[2]{0}', space=sflag, size = 0x8, scoped, tag = 'scoped memory for tpu_custom_call.1']
    %34 = vsyncpa [#allocation9], 0
    loop: start=0, step=1, limit=5
    $region2: #{tpu_custom_call.1} parent=1 // loop_pre_header
      _
    $region3: #{tpu_custom_call.1} parent=1 // loop_header
      %s36 = sphi 0, %s40
      %p37 = scmp.ge.s32.totalorder %s36, 5
      %s44 = sphi 0, %s44
      %s46 = sphi 0, %s44
      %s47 = sphi 0, %s46
      %s61 = sphi 0, %s47
      %s65 = sphi 0, %s65
      %s67 = sphi 0, %s65
      %s68 = sphi 0, %s67
      %s82 = sphi 0, %s68
      %s86 = sphi 0, %s86
      %s88 = sphi 0, %s86
      %s89 = sphi 0, %s88
      %s103 = sphi 0, %s89
      %s107 = sphi 0, %s107
      %s109 = sphi 0, %s107
      %s110 = sphi 0, %s109
      %s124 = sphi 0, %s110
      %s128 = sphi 0, %s128
      %s130 = sphi 0, %s128
      %s131 = sphi 0, %s130
      %s145 = sphi 0, %s131
      %s149 = sphi 0, %s149
      %s151 = sphi 0, %s149
      %s152 = sphi 0, %s151
      %s166 = sphi 0, %s152
      %s170 = sphi 0, %s170
      %s172 = sphi 0, %s170
      %s173 = sphi 0, %s172
      %s187 = sphi 0, %s173
      %s191 = sphi 0, %s191
      %s193 = sphi 0, %s191
      %s194 = sphi 0, %s193
      %s208 = sphi 0, %s194
      %s212 = sphi 0, %s212
      %s214 = sphi 0, %s212
      %s215 = sphi 0, %s214
      %s229 = sphi 0, %s215
      %s233 = sphi 0, %s233
      %s235 = sphi 0, %s233
      %s236 = sphi 0, %s235
      %s250 = sphi 0, %s236
      %s254 = sphi 0, %s254
      %s256 = sphi 0, %s254
      %s257 = sphi 0, %s256
      %s271 = sphi 0, %s257
      %s275 = sphi 0, %s275
      %s277 = sphi 0, %s275
      %s278 = sphi 0, %s277
      %s292 = sphi 0, %s278
      %s298 = sphi 0, %s300
      %s301 = sphi 0, %s298
      %s302 = sphi 0, %s301
      %s318 = sphi 0, %s302
    $region4: #{tpu_custom_call.1} parent=1 // loop_header_branch
      %39 = sbr.rel (%p37) target = $region8
    $region5: #{tpu_custom_call.1} parent=1 // loop_body
      %s41 = ssub.s32 %s36, 1
      %s42 = ssub.s32 %s36, 2
      %s43 = sadd.s32 %s36, 1
      %s45 = sadd.s32 %s44, 1
      %p48 = scmp.eq.s32.totalorder %s36, 2
      %p49 = scmp.ne.s32.totalorder %s44, %s46
      %p50 = scmp.eq.s32.totalorder %s36, 0
      %p51 = por %p49, %p50
      %p52 = scmp.ne.s32.totalorder %s44, %s46
      %p53 = scmp.eq.s32.totalorder %s41, 2
      %p54 = por %p52, %p53
      %p55 = scmp.ne.s32.totalorder %s46, %s47
      %p56 = scmp.eq.s32.totalorder %s41, 0
      %p57 = por %p55, %p56
      %p58 = scmp.ne.s32.totalorder %s46, %s47
      %p59 = scmp.eq.s32.totalorder %s42, 2
      %p60 = por %p58, %p59
      %p62 = scmp.ne.s32.totalorder %s47, %s61
      %p63 = scmp.eq.s32.totalorder %s42, 0
      %p64 = por %p62, %p63
      %s66 = sadd.s32 %s65, 1
      %p69 = scmp.eq.s32.totalorder %s36, 2
      %p70 = scmp.ne.s32.totalorder %s65, %s67
      %p71 = scmp.eq.s32.totalorder %s36, 0
      %p72 = por %p70, %p71
      %p73 = scmp.ne.s32.totalorder %s65, %s67
      %p74 = scmp.eq.s32.totalorder %s41, 2
      %p75 = por %p73, %p74
      %p76 = scmp.ne.s32.totalorder %s67, %s68
      %p77 = scmp.eq.s32.totalorder %s41, 0
      %p78 = por %p76, %p77
      %p79 = scmp.ne.s32.totalorder %s67, %s68
      %p80 = scmp.eq.s32.totalorder %s42, 2
      %p81 = por %p79, %p80
      %p83 = scmp.ne.s32.totalorder %s68, %s82
      %p84 = scmp.eq.s32.totalorder %s42, 0
      %p85 = por %p83, %p84
      %s87 = sadd.s32 %s86, 1
      %p90 = scmp.eq.s32.totalorder %s36, 2
      %p91 = scmp.ne.s32.totalorder %s86, %s88
      %p92 = scmp.eq.s32.totalorder %s36, 0
      %p93 = por %p91, %p92
      %p94 = scmp.ne.s32.totalorder %s86, %s88
      %p95 = scmp.eq.s32.totalorder %s41, 2
      %p96 = por %p94, %p95
      %p97 = scmp.ne.s32.totalorder %s88, %s89
      %p98 = scmp.eq.s32.totalorder %s41, 0
      %p99 = por %p97, %p98
      %p100 = scmp.ne.s32.totalorder %s88, %s89
      %p101 = scmp.eq.s32.totalorder %s42, 2
      %p102 = por %p100, %p101
      %p104 = scmp.ne.s32.totalorder %s89, %s103
      %p105 = scmp.eq.s32.totalorder %s42, 0
      %p106 = por %p104, %p105
      %s108 = sadd.s32 %s107, 1
      %p111 = scmp.eq.s32.totalorder %s36, 2
      %p112 = scmp.ne.s32.totalorder %s107, %s109
      %p113 = scmp.eq.s32.totalorder %s36, 0
      %p114 = por %p112, %p113
      %p115 = scmp.ne.s32.totalorder %s107, %s109
      %p116 = scmp.eq.s32.totalorder %s41, 2
      %p117 = por %p115, %p116
      %p118 = scmp.ne.s32.totalorder %s109, %s110
      %p119 = scmp.eq.s32.totalorder %s41, 0
      %p120 = por %p118, %p119
      %p121 = scmp.ne.s32.totalorder %s109, %s110
      %p122 = scmp.eq.s32.totalorder %s42, 2
      %p123 = por %p121, %p122
      %p125 = scmp.ne.s32.totalorder %s110, %s124
      %p126 = scmp.eq.s32.totalorder %s42, 0
      %p127 = por %p125, %p126
      %s129 = sadd.s32 %s128, 1
      %p132 = scmp.eq.s32.totalorder %s36, 2
      %p133 = scmp.ne.s32.totalorder %s128, %s130
      %p134 = scmp.eq.s32.totalorder %s36, 0
      %p135 = por %p133, %p134
      %p136 = scmp.ne.s32.totalorder %s128, %s130
      %p137 = scmp.eq.s32.totalorder %s41, 2
      %p138 = por %p136, %p137
      %p139 = scmp.ne.s32.totalorder %s130, %s131
      %p140 = scmp.eq.s32.totalorder %s41, 0
      %p141 = por %p139, %p140
      %p142 = scmp.ne.s32.totalorder %s130, %s131
      %p143 = scmp.eq.s32.totalorder %s42, 2
      %p144 = por %p142, %p143
      %p146 = scmp.ne.s32.totalorder %s131, %s145
      %p147 = scmp.eq.s32.totalorder %s42, 0
      %p148 = por %p146, %p147
      %s150 = sadd.s32 %s149, 1
      %p153 = scmp.eq.s32.totalorder %s36, 2
      %p154 = scmp.ne.s32.totalorder %s149, %s151
      %p155 = scmp.eq.s32.totalorder %s36, 0
      %p156 = por %p154, %p155
      %p157 = scmp.ne.s32.totalorder %s149, %s151
      %p158 = scmp.eq.s32.totalorder %s41, 2
      %p159 = por %p157, %p158
      %p160 = scmp.ne.s32.totalorder %s151, %s152
      %p161 = scmp.eq.s32.totalorder %s41, 0
      %p162 = por %p160, %p161
      %p163 = scmp.ne.s32.totalorder %s151, %s152
      %p164 = scmp.eq.s32.totalorder %s42, 2
      %p165 = por %p163, %p164
      %p167 = scmp.ne.s32.totalorder %s152, %s166
      %p168 = scmp.eq.s32.totalorder %s42, 0
      %p169 = por %p167, %p168
      %s171 = sadd.s32 %s170, 1
      %p174 = scmp.eq.s32.totalorder %s36, 2
      %p175 = scmp.ne.s32.totalorder %s170, %s172
      %p176 = scmp.eq.s32.totalorder %s36, 0
      %p177 = por %p175, %p176
      %p178 = scmp.ne.s32.totalorder %s170, %s172
      %p179 = scmp.eq.s32.totalorder %s41, 2
      %p180 = por %p178, %p179
      %p181 = scmp.ne.s32.totalorder %s172, %s173
      %p182 = scmp.eq.s32.totalorder %s41, 0
      %p183 = por %p181, %p182
      %p184 = scmp.ne.s32.totalorder %s172, %s173
      %p185 = scmp.eq.s32.totalorder %s42, 2
      %p186 = por %p184, %p185
      %p188 = scmp.ne.s32.totalorder %s173, %s187
      %p189 = scmp.eq.s32.totalorder %s42, 0
      %p190 = por %p188, %p189
      %s192 = sadd.s32 %s191, 1
      %p195 = scmp.eq.s32.totalorder %s36, 2
      %p196 = scmp.ne.s32.totalorder %s191, %s193
      %p197 = scmp.eq.s32.totalorder %s36, 0
      %p198 = por %p196, %p197
      %p199 = scmp.ne.s32.totalorder %s191, %s193
      %p200 = scmp.eq.s32.totalorder %s41, 2
      %p201 = por %p199, %p200
      %p202 = scmp.ne.s32.totalorder %s193, %s194
      %p203 = scmp.eq.s32.totalorder %s41, 0
      %p204 = por %p202, %p203
      %p205 = scmp.ne.s32.totalorder %s193, %s194
      %p206 = scmp.eq.s32.totalorder %s42, 2
      %p207 = por %p205, %p206
      %p209 = scmp.ne.s32.totalorder %s194, %s208
      %p210 = scmp.eq.s32.totalorder %s42, 0
      %p211 = por %p209, %p210
      %s213 = sadd.s32 %s212, 1
      %p216 = scmp.eq.s32.totalorder %s36, 2
      %p217 = scmp.ne.s32.totalorder %s212, %s214
      %p218 = scmp.eq.s32.totalorder %s36, 0
      %p219 = por %p217, %p218
      %p220 = scmp.ne.s32.totalorder %s212, %s214
      %p221 = scmp.eq.s32.totalorder %s41, 2
      %p222 = por %p220, %p221
      %p223 = scmp.ne.s32.totalorder %s214, %s215
      %p224 = scmp.eq.s32.totalorder %s41, 0
      %p225 = por %p223, %p224
      %p226 = scmp.ne.s32.totalorder %s214, %s215
      %p227 = scmp.eq.s32.totalorder %s42, 2
      %p228 = por %p226, %p227
      %p230 = scmp.ne.s32.totalorder %s215, %s229
      %p231 = scmp.eq.s32.totalorder %s42, 0
      %p232 = por %p230, %p231
      %s234 = sadd.s32 %s233, 1
      %p237 = scmp.eq.s32.totalorder %s36, 2
      %p238 = scmp.ne.s32.totalorder %s233, %s235
      %p239 = scmp.eq.s32.totalorder %s36, 0
      %p240 = por %p238, %p239
      %p241 = scmp.ne.s32.totalorder %s233, %s235
      %p242 = scmp.eq.s32.totalorder %s41, 2
      %p243 = por %p241, %p242
      %p244 = scmp.ne.s32.totalorder %s235, %s236
      %p245 = scmp.eq.s32.totalorder %s41, 0
      %p246 = por %p244, %p245
      %p247 = scmp.ne.s32.totalorder %s235, %s236
      %p248 = scmp.eq.s32.totalorder %s42, 2
      %p249 = por %p247, %p248
      %p251 = scmp.ne.s32.totalorder %s236, %s250
      %p252 = scmp.eq.s32.totalorder %s42, 0
      %p253 = por %p251, %p252
      %s255 = sadd.s32 %s254, 1
      %p258 = scmp.eq.s32.totalorder %s36, 2
      %p259 = scmp.ne.s32.totalorder %s254, %s256
      %p260 = scmp.eq.s32.totalorder %s36, 0
      %p261 = por %p259, %p260
      %p262 = scmp.ne.s32.totalorder %s254, %s256
      %p263 = scmp.eq.s32.totalorder %s41, 2
      %p264 = por %p262, %p263
      %p265 = scmp.ne.s32.totalorder %s256, %s257
      %p266 = scmp.eq.s32.totalorder %s41, 0
      %p267 = por %p265, %p266
      %p268 = scmp.ne.s32.totalorder %s256, %s257
      %p269 = scmp.eq.s32.totalorder %s42, 2
      %p270 = por %p268, %p269
      %p272 = scmp.ne.s32.totalorder %s257, %s271
      %p273 = scmp.eq.s32.totalorder %s42, 0
      %p274 = por %p272, %p273
      %s276 = sadd.s32 %s275, 1
      %p279 = scmp.eq.s32.totalorder %s36, 2
      %p280 = scmp.ne.s32.totalorder %s275, %s277
      %p281 = scmp.eq.s32.totalorder %s36, 0
      %p282 = por %p280, %p281
      %p283 = scmp.ne.s32.totalorder %s275, %s277
      %p284 = scmp.eq.s32.totalorder %s41, 2
      %p285 = por %p283, %p284
      %p286 = scmp.ne.s32.totalorder %s277, %s278
      %p287 = scmp.eq.s32.totalorder %s41, 0
      %p288 = por %p286, %p287
      %p289 = scmp.ne.s32.totalorder %s277, %s278
      %p290 = scmp.eq.s32.totalorder %s42, 2
      %p291 = por %p289, %p290
      %p293 = scmp.ne.s32.totalorder %s278, %s292
      %p294 = scmp.eq.s32.totalorder %s42, 0
      %p295 = por %p293, %p294
      %s296 = ssub.s32 %s36, %s43
      %p297 = scmp.eq.s32.totalorder %s296, 0
      %s299 = sadd.s32 %s298, 1
      %s300 = scalar_select %p297, %s298, %s299
      %p303 = pneg %p297
      %p304 = scmp.eq.s32.totalorder %s36, 2
      %p305 = por %p303, %p304
      %p306 = scmp.ne.s32.totalorder %s298, %s301
      %p307 = scmp.eq.s32.totalorder %s36, 0
      %p308 = por %p306, %p307
      %p309 = scmp.ne.s32.totalorder %s298, %s301
      %p310 = scmp.eq.s32.totalorder %s41, 2
      %p311 = por %p309, %p310
      %p312 = scmp.ne.s32.totalorder %s301, %s302
      %p313 = scmp.eq.s32.totalorder %s41, 0
      %p314 = por %p312, %p313
      %p315 = scmp.ne.s32.totalorder %s301, %s302
      %p316 = scmp.eq.s32.totalorder %s42, 2
      %p317 = por %p315, %p316
      %p319 = scmp.ne.s32.totalorder %s302, %s318
      %p320 = scmp.eq.s32.totalorder %s42, 0
      %p321 = por %p319, %p320
      %p322 = scmp.le.s32.totalorder 1, %s36
      %p323 = scmp.lt.s32.totalorder %s36, 4
      %p324 = pnand %p322, %p323
      %p325 = pneg %p324
      // Predicated region
      $region9: #{tpu_custom_call.1} parent=5 // pred_check
        _
      $region10: #{tpu_custom_call.1} parent=5 // pred_check_branch
        %327 = sbr.rel (%p324) target = $region12
      $region11: #{tpu_custom_call.1} parent=5 // pred_region
        %s328 = ssub.s32 %s36, 1
        // Predicated region
        $region13: #{tpu_custom_call.1} parent=11 // pred_check
          %p329 = pneg %p57
        $region14: #{tpu_custom_call.1} parent=11 // pred_check_branch
          %331 = sbr.rel (%p329) target = $region16
        $region15: #{tpu_custom_call.1} parent=11 // pred_region
          _
        $region16: #{tpu_custom_call.1} parent=11 // pred_fallthru
          _
        // Predicated region
        $region17: #{tpu_custom_call.1} parent=11 // pred_check
          %p332 = pneg %p78
        $region18: #{tpu_custom_call.1} parent=11 // pred_check_branch
          %334 = sbr.rel (%p332) target = $region20
        $region19: #{tpu_custom_call.1} parent=11 // pred_region
          %336 = vsyncadd [#allocation9], 0
          %s337 = sshll.u32 %s5, 4
          %s338 = int_to_ptr.hbm [resolvable:$true] %s337
          %s339 = sshll.u32 [#allocation8], 4
          %s340 = int_to_ptr.vmem [resolvable:$true] %s339
          %345 = dma.hbm_to_vmem [thread:$0]  %s338, 1024, %s340, [#allocation9], 64, 64, 4
        $region20: #{tpu_custom_call.1} parent=11 // pred_fallthru
          _
        // Predicated region
        $region21: #{tpu_custom_call.1} parent=11 // pred_check
          %p346 = pneg %p99
        $region22: #{tpu_custom_call.1} parent=11 // pred_check_branch
          %348 = sbr.rel (%p346) target = $region24
        $region23: #{tpu_custom_call.1} parent=11 // pred_region
          _
        $region24: #{tpu_custom_call.1} parent=11 // pred_fallthru
          _
        // Predicated region
        $region25: #{tpu_custom_call.1} parent=11 // pred_check
          %p349 = pneg %p120
        $region26: #{tpu_custom_call.1} parent=11 // pred_check_branch
          %351 = sbr.rel (%p349) target = $region28
        $region27: #{tpu_custom_call.1} parent=11 // pred_region
          _
        $region28: #{tpu_custom_call.1} parent=11 // pred_fallthru
          _
        // Predicated region
        $region29: #{tpu_custom_call.1} parent=11 // pred_check
          %p352 = pneg %p141
        $region30: #{tpu_custom_call.1} parent=11 // pred_check_branch
          %354 = sbr.rel (%p352) target = $region32
        $region31: #{tpu_custom_call.1} parent=11 // pred_region
          _
        $region32: #{tpu_custom_call.1} parent=11 // pred_fallthru
          _
        // Predicated region
        $region33: #{tpu_custom_call.1} parent=11 // pred_check
          %p355 = pneg %p162
        $region34: #{tpu_custom_call.1} parent=11 // pred_check_branch
          %357 = sbr.rel (%p355) target = $region36
        $region35: #{tpu_custom_call.1} parent=11 // pred_region
          _
        $region36: #{tpu_custom_call.1} parent=11 // pred_fallthru
          _
        // Predicated region
        $region37: #{tpu_custom_call.1} parent=11 // pred_check
          %p358 = pneg %p183
        $region38: #{tpu_custom_call.1} parent=11 // pred_check_branch
          %360 = sbr.rel (%p358) target = $region40
        $region39: #{tpu_custom_call.1} parent=11 // pred_region
          _
        $region40: #{tpu_custom_call.1} parent=11 // pred_fallthru
          _
        // Predicated region
        $region41: #{tpu_custom_call.1} parent=11 // pred_check
          %p361 = pneg %p204
        $region42: #{tpu_custom_call.1} parent=11 // pred_check_branch
          %363 = sbr.rel (%p361) target = $region44
        $region43: #{tpu_custom_call.1} parent=11 // pred_region
          _
        $region44: #{tpu_custom_call.1} parent=11 // pred_fallthru
          _
        // Predicated region
        $region45: #{tpu_custom_call.1} parent=11 // pred_check
          %p364 = pneg %p225
        $region46: #{tpu_custom_call.1} parent=11 // pred_check_branch
          %366 = sbr.rel (%p364) target = $region48
        $region47: #{tpu_custom_call.1} parent=11 // pred_region
          _
        $region48: #{tpu_custom_call.1} parent=11 // pred_fallthru
          _
        // Predicated region
        $region49: #{tpu_custom_call.1} parent=11 // pred_check
          %p367 = pneg %p246
        $region50: #{tpu_custom_call.1} parent=11 // pred_check_branch
          %369 = sbr.rel (%p367) target = $region52
        $region51: #{tpu_custom_call.1} parent=11 // pred_region
          _
        $region52: #{tpu_custom_call.1} parent=11 // pred_fallthru
          _
        // Predicated region
        $region53: #{tpu_custom_call.1} parent=11 // pred_check
          %p370 = pneg %p267
        $region54: #{tpu_custom_call.1} parent=11 // pred_check_branch
          %372 = sbr.rel (%p370) target = $region56
        $region55: #{tpu_custom_call.1} parent=11 // pred_region
          _
        $region56: #{tpu_custom_call.1} parent=11 // pred_fallthru
          _
        // Predicated region
        $region57: #{tpu_custom_call.1} parent=11 // pred_check
          %p373 = pneg %p288
        $region58: #{tpu_custom_call.1} parent=11 // pred_check_branch
          %375 = sbr.rel (%p373) target = $region60
        $region59: #{tpu_custom_call.1} parent=11 // pred_region
          _
        $region60: #{tpu_custom_call.1} parent=11 // pred_fallthru
          _
      $region12: #{tpu_custom_call.1} parent=5 // pred_fallthru
        _
      %p376 = scmp.lt.s32.totalorder %s36, 3
      // Predicated region
      $region61: #{tpu_custom_call.1} parent=5 // pred_check
        %p377 = pneg %p376
      $region62: #{tpu_custom_call.1} parent=5 // pred_check_branch
        %379 = sbr.rel (%p377) target = $region64
      $region63: #{tpu_custom_call.1} parent=5 // pred_region
        _
      $region64: #{tpu_custom_call.1} parent=5 // pred_fallthru
        _
      %p380 = scmp.le.s32.totalorder 1, %s36
      %p381 = scmp.lt.s32.totalorder %s36, 4
      %p382 = pnand %p380, %p381
      %p383 = pneg %p382
      // Predicated region
      $region65: #{tpu_custom_call.1} parent=5 // pred_check
        _
      $region66: #{tpu_custom_call.1} parent=5 // pred_check_branch
        %385 = sbr.rel (%p382) target = $region68
      $region67: #{tpu_custom_call.1} parent=5 // pred_region
        %s386 = ssub.s32 %s36, 1
        // Predicated region
        $region69: #{tpu_custom_call.1} parent=67 // pred_check
          %p387 = pneg %p78
        $region70: #{tpu_custom_call.1} parent=67 // pred_check_branch
          %389 = sbr.rel (%p387) target = $region72
        $region71: #{tpu_custom_call.1} parent=67 // pred_region
          %391 = dma.done [#allocation9], 1024
        $region72: #{tpu_custom_call.1} parent=67 // pred_fallthru
          _
        %p392 = pneg %p57
        %p393 = pneg %p54
        %p394 = pneg %p78
        %p395 = pneg %p75
        %p396 = pneg %p99
        %p397 = pneg %p96
        %p398 = pneg %p120
        %p399 = pneg %p117
        %p400 = pneg %p141
        %p401 = pneg %p138
        %p402 = pneg %p162
        %p403 = pneg %p159
        %p404 = pneg %p183
        %p405 = pneg %p180
        %p406 = pneg %p204
        %p407 = pneg %p201
        %p408 = pneg %p225
        %p409 = pneg %p222
        %p410 = pneg %p246
        %p411 = pneg %p243
        %p412 = pneg %p267
        %p413 = pneg %p264
        %p414 = pneg %p288
        %p415 = pneg %p285
        %p416 = pneg %p314
        %p417 = pneg %p311
        %p418 = scmp.lt.s32.totalorder %s41, 2
        %s419 = scalar_select %p418, %s41, 2
        %s420 = smul.addr %s419, 8
        %s421 = scalar_lea.vmem %s16, %s420
        %p422 = scmp.lt.s32.totalorder %s41, 2
        %s423 = scalar_select %p422, %s41, 2
        %s424 = smul.addr %s423, 8
        %s425 = scalar_lea.vmem %s16, %s424
        %s427 = smul.u32 %s41, 8
        loop: start=0, step=1, limit=8
        $region73: #{tpu_custom_call.1} parent=67 // loop_pre_header
          _
        $region74: #{tpu_custom_call.1} parent=67 // loop_header
          %s429 = sphi 0, %s433
          %p430 = scmp.ge.s32.totalorder %s429, 8
        $region75: #{tpu_custom_call.1} parent=67 // loop_header_branch
          %432 = sbr.rel (%p430) target = $region79
        $region76: #{tpu_custom_call.1} parent=67 // loop_body
          %s434 = sadd.s32 %s427, %s429
          %s435 = sld [smem:[#allocation6 + %s434]]
          %s436 = sld [smem:[#allocation7 + %s434]]
          %s437 = scalar_lea.vmem %s2, %s435
          %s438 = scalar_lea.vmem [#allocation2], %s429
          // Predicated region
          $region80: #{tpu_custom_call.1} parent=76 // pred_check
            _
          $region81: #{tpu_custom_call.1} parent=76 // pred_check_branch
            %440 = sbr.rel target = $region83
          $region82: #{tpu_custom_call.1} parent=76 // pred_region
            // Predicated region
            $region95: #{tpu_custom_call.1} parent=82 // pred_check
              _
            $region96: #{tpu_custom_call.1} parent=82 // pred_check_branch
              %456 = sbr.rel (0) target = $region98
            $region97: #{tpu_custom_call.1} parent=82 // pred_region
              %s458 = ssub.s32 2, 1
              loop: start=0, step=1, limit=1
              $region99: #{tpu_custom_call.1} parent=97 // loop_pre_header
                _
              $region100: #{tpu_custom_call.1} parent=97 // loop_header
                %s460 = sphi 0, %s464
                %p461 = scmp.ge.s32.totalorder %s460, 1
                %s465 = sphi %s437, %s437
                %s466 = sphi %s438, %s438
              $region101: #{tpu_custom_call.1} parent=97 // loop_header_branch
                %463 = sbr.rel (%p461) target = $region105
              $region102: #{tpu_custom_call.1} parent=97 // loop_body
                %v467 = vld [vmem:[%s465] sm:%s458]
                %468 = vst [vmem:[%s466] sm:%s458] %v467
              $region103: #{tpu_custom_call.1} parent=97 // loop_footer
                %s464 = sadd.s32 1, %s460
              $region104: #{tpu_custom_call.1} parent=97 // loop_footer_branch
                %459 = sbr.rel target = $region100
              $region105: #{tpu_custom_call.1} parent=97 // loop_exit
                _
            $region98: #{tpu_custom_call.1} parent=82 // pred_fallthru
              _
          $region83: #{tpu_custom_call.1} parent=76 // pred_fallthru
            _
          // Predicated region
          $region84: #{tpu_custom_call.1} parent=76 // pred_check
            _
          $region85: #{tpu_custom_call.1} parent=76 // pred_check_branch
            %442 = sbr.rel (0) target = $region87
          $region86: #{tpu_custom_call.1} parent=76 // pred_region
            %s444 = ssub.s32 2, 1
            loop: start=0, step=1, limit=1
            $region88: #{tpu_custom_call.1} parent=86 // loop_pre_header
              _
            $region89: #{tpu_custom_call.1} parent=86 // loop_header
              %s446 = sphi 0, %s450
              %p447 = scmp.ge.s32.totalorder %s446, 1
              %s451 = sphi %s437, %s437
              %s452 = sphi %s438, %s438
            $region90: #{tpu_custom_call.1} parent=86 // loop_header_branch
              %449 = sbr.rel (%p447) target = $region94
            $region91: #{tpu_custom_call.1} parent=86 // loop_body
              %v453 = vld [vmem:[%s451] sm:%s444]
              %454 = vst [vmem:[%s452] sm:%s444] %v453
            $region92: #{tpu_custom_call.1} parent=86 // loop_footer
              %s450 = sadd.s32 1, %s446
            $region93: #{tpu_custom_call.1} parent=86 // loop_footer_branch
              %445 = sbr.rel target = $region89
            $region94: #{tpu_custom_call.1} parent=86 // loop_exit
              _
          $region87: #{tpu_custom_call.1} parent=76 // pred_fallthru
            _
          // Predicated region
          $region106: #{tpu_custom_call.1} parent=76 // pred_check
            _
          $region107: #{tpu_custom_call.1} parent=76 // pred_check_branch
            %471 = sbr.rel (0) target = $region109
          $region108: #{tpu_custom_call.1} parent=76 // pred_region
            %472 = vsyncadd [#allocation4], 16
          $region109: #{tpu_custom_call.1} parent=76 // pred_fallthru
            _
          %s473 = scalar_lea.vmem %s3, %s436
          %s474 = scalar_lea.vmem [#allocation3], %s429
          %s475 = scalar_lea.sflag [#allocation4], 1
          // Predicated region
          $region110: #{tpu_custom_call.1} parent=76 // pred_check
            _
          $region111: #{tpu_custom_call.1} parent=76 // pred_check_branch
            %477 = sbr.rel target = $region113
          $region112: #{tpu_custom_call.1} parent=76 // pred_region
            // Predicated region
            $region125: #{tpu_custom_call.1} parent=112 // pred_check
              _
            $region126: #{tpu_custom_call.1} parent=112 // pred_check_branch
              %493 = sbr.rel (0) target = $region128
            $region127: #{tpu_custom_call.1} parent=112 // pred_region
              %s495 = ssub.s32 2, 1
              loop: start=0, step=1, limit=1
              $region129: #{tpu_custom_call.1} parent=127 // loop_pre_header
                _
              $region130: #{tpu_custom_call.1} parent=127 // loop_header
                %s497 = sphi 0, %s501
                %p498 = scmp.ge.s32.totalorder %s497, 1
                %s502 = sphi %s473, %s473
                %s503 = sphi %s474, %s474
              $region131: #{tpu_custom_call.1} parent=127 // loop_header_branch
                %500 = sbr.rel (%p498) target = $region135
              $region132: #{tpu_custom_call.1} parent=127 // loop_body
                %v504 = vld [vmem:[%s502] sm:%s495]
                %505 = vst [vmem:[%s503] sm:%s495] %v504
              $region133: #{tpu_custom_call.1} parent=127 // loop_footer
                %s501 = sadd.s32 1, %s497
              $region134: #{tpu_custom_call.1} parent=127 // loop_footer_branch
                %496 = sbr.rel target = $region130
              $region135: #{tpu_custom_call.1} parent=127 // loop_exit
                _
            $region128: #{tpu_custom_call.1} parent=112 // pred_fallthru
              _
          $region113: #{tpu_custom_call.1} parent=76 // pred_fallthru
            _
          // Predicated region
          $region114: #{tpu_custom_call.1} parent=76 // pred_check
            _
          $region115: #{tpu_custom_call.1} parent=76 // pred_check_branch
            %479 = sbr.rel (0) target = $region117
          $region116: #{tpu_custom_call.1} parent=76 // pred_region
            %s481 = ssub.s32 2, 1
            loop: start=0, step=1, limit=1
            $region118: #{tpu_custom_call.1} parent=116 // loop_pre_header
              _
            $region119: #{tpu_custom_call.1} parent=116 // loop_header
              %s483 = sphi 0, %s487
              %p484 = scmp.ge.s32.totalorder %s483, 1
              %s488 = sphi %s473, %s473
              %s489 = sphi %s474, %s474
            $region120: #{tpu_custom_call.1} parent=116 // loop_header_branch
              %486 = sbr.rel (%p484) target = $region124
            $region121: #{tpu_custom_call.1} parent=116 // loop_body
              %v490 = vld [vmem:[%s488] sm:%s481]
              %491 = vst [vmem:[%s489] sm:%s481] %v490
            $region122: #{tpu_custom_call.1} parent=116 // loop_footer
              %s487 = sadd.s32 1, %s483
            $region123: #{tpu_custom_call.1} parent=116 // loop_footer_branch
              %482 = sbr.rel target = $region119
            $region124: #{tpu_custom_call.1} parent=116 // loop_exit
              _
          $region117: #{tpu_custom_call.1} parent=76 // pred_fallthru
            _
          // Predicated region
          $region136: #{tpu_custom_call.1} parent=76 // pred_check
            _
          $region137: #{tpu_custom_call.1} parent=76 // pred_check_branch
            %508 = sbr.rel (0) target = $region139
          $region138: #{tpu_custom_call.1} parent=76 // pred_region
            %509 = vsyncadd %s475, 16
          $region139: #{tpu_custom_call.1} parent=76 // pred_fallthru
            _
        $region77: #{tpu_custom_call.1} parent=67 // loop_footer
          %s433 = sadd.s32 1, %s429
        $region78: #{tpu_custom_call.1} parent=67 // loop_footer_branch
          %428 = sbr.rel target = $region74
        $region79: #{tpu_custom_call.1} parent=67 // loop_exit
          _
        loop: start=0, step=1, limit=8
        $region140: #{tpu_custom_call.1} parent=67 // loop_pre_header
          _
        $region141: #{tpu_custom_call.1} parent=67 // loop_header
          %s511 = sphi 0, %s515
          %p512 = scmp.ge.s32.totalorder %s511, 8
        $region142: #{tpu_custom_call.1} parent=67 // loop_header_branch
          %514 = sbr.rel (%p512) target = $region146
        $region143: #{tpu_custom_call.1} parent=67 // loop_body
          %s516 = sadd.s32 %s427, %s511
          %s517 = sld [smem:[#allocation6 + %s516]]
          %s518 = sld [smem:[#allocation7 + %s516]]
          %520 = dma.done [#allocation4], 16
          %s521 = scalar_lea.sflag [#allocation4], 1
          %523 = dma.done %s521, 16
        $region144: #{tpu_custom_call.1} parent=67 // loop_footer
          %s515 = sadd.s32 1, %s511
        $region145: #{tpu_custom_call.1} parent=67 // loop_footer_branch
          %510 = sbr.rel target = $region141
        $region146: #{tpu_custom_call.1} parent=67 // loop_exit
          _
        %v524 = vld [vmem:[#allocation2] sm:$0xff]
        %v525 = vld [vmem:[#allocation3] sm:$0xff]
        %v526 = vpack.c.bf16 %v524, %v524
        %v527 = vpack.c.bf16 %v525, %v525
        %v528 = vld [vmem:[%s4] sm:$0xf]
        %v529 = vld [vmem:[%s4 + $0x4] sm:$0xf]
        %v530 = vld [vmem:[%s4 + $0x8] sm:$0xf]
        %v531 = vld [vmem:[%s4 + $0xc] sm:$0xf]
        %v532 = vld [vmem:[%s4 + $0x10] sm:$0xf]
        %v533 = vld [vmem:[%s4 + $0x14] sm:$0xf]
        %v534 = vld [vmem:[%s4 + $0x18] sm:$0xf]
        %v535 = vld [vmem:[%s4 + $0x1c] sm:$0xf]
        %v536 = vld [vmem:[%s4 + $0x20] sm:$0xf]
        %v537 = vld [vmem:[%s4 + $0x24] sm:$0xf]
        %v538 = vld [vmem:[%s4 + $0x28] sm:$0xf]
        %v539 = vld [vmem:[%s4 + $0x2c] sm:$0xf]
        %v540 = vld [vmem:[%s4 + $0x30] sm:$0xf]
        %v541 = vld [vmem:[%s4 + $0x34] sm:$0xf]
        %v542 = vld [vmem:[%s4 + $0x38] sm:$0xf]
        %v543 = vld [vmem:[%s4 + $0x3c] sm:$0xf]
        %v544 = vld [vmem:[#allocation8] sm:$0xf]
        %v545 = vld [vmem:[#allocation8 + $0x4] sm:$0xf]
        %v546 = vld [vmem:[#allocation8 + $0x8] sm:$0xf]
        %v547 = vld [vmem:[#allocation8 + $0xc] sm:$0xf]
        %v548 = vld [vmem:[#allocation8 + $0x10] sm:$0xf]
        %v549 = vld [vmem:[#allocation8 + $0x14] sm:$0xf]
        %v550 = vld [vmem:[#allocation8 + $0x18] sm:$0xf]
        %v551 = vld [vmem:[#allocation8 + $0x1c] sm:$0xf]
        %v552 = vld [vmem:[#allocation8 + $0x20] sm:$0xf]
        %v553 = vld [vmem:[#allocation8 + $0x24] sm:$0xf]
        %v554 = vld [vmem:[#allocation8 + $0x28] sm:$0xf]
        %v555 = vld [vmem:[#allocation8 + $0x2c] sm:$0xf]
        %v556 = vld [vmem:[#allocation8 + $0x30] sm:$0xf]
        %v557 = vld [vmem:[#allocation8 + $0x34] sm:$0xf]
        %v558 = vld [vmem:[#allocation8 + $0x38] sm:$0xf]
        %v559 = vld [vmem:[#allocation8 + $0x3c] sm:$0xf]
        %v576 = vunpack.c.l.b16 %v544
        %v577 = vunpack.c.l.b16 %v545
        %v578 = vunpack.c.l.b16 %v546
        %v579 = vunpack.c.l.b16 %v547
        %v580 = vunpack.c.l.b16 %v548
        %v581 = vunpack.c.l.b16 %v549
        %v582 = vunpack.c.l.b16 %v550
        %v583 = vunpack.c.l.b16 %v551
        %v584 = vunpack.c.l.b16 %v552
        %v585 = vunpack.c.l.b16 %v553
        %v586 = vunpack.c.l.b16 %v554
        %v587 = vunpack.c.l.b16 %v555
        %v588 = vunpack.c.l.b16 %v556
        %v589 = vunpack.c.l.b16 %v557
        %v590 = vunpack.c.l.b16 %v558
        %v591 = vunpack.c.l.b16 %v559
        %v592 = vpack.c.b16 %v577, %v576
        %v593 = vpack.c.b16 %v579, %v578
        %v594 = vpack.c.b16 %v581, %v580
        %v595 = vpack.c.b16 %v583, %v582
        %v596 = vpack.c.b16 %v585, %v584
        %v597 = vpack.c.b16 %v587, %v586
        %v598 = vpack.c.b16 %v589, %v588
        %v599 = vpack.c.b16 %v591, %v590
        %608 = vmatpush.bf16.msra.mxu0 %v599
        %609 = vmatpush.bf16.msra.mxu0 %v598
        %610 = vmatpush.bf16.msra.mxu0 %v597
        %611 = vmatpush.bf16.msra.mxu0 %v596
        %612 = vmatpush.bf16.msra.mxu0 %v595
        %613 = vmatpush.bf16.msra.mxu0 %v594
        %614 = vmatpush.bf16.msra.mxu0 %v593
        %615 = vmatpush.bf16.msra.mxu0 %v592
        %616 = vmatmul.bf16.gmra.mxu0 %v527
        %v617 = vpop.f32.mrf.mxu0
        %v618 = vadd.f32 0.0, %v617
        %v619 = vpop.f32.mrf.mxu0
        %620 = vdwg.mxu0
        %v637 = vunpack.c.l.b16 %v528
        %v638 = vunpack.c.l.b16 %v529
        %v639 = vunpack.c.l.b16 %v530
        %v640 = vunpack.c.l.b16 %v531
        %v641 = vunpack.c.l.b16 %v532
        %v642 = vunpack.c.l.b16 %v533
        %v643 = vunpack.c.l.b16 %v534
        %v644 = vunpack.c.l.b16 %v535
        %v645 = vunpack.c.l.b16 %v536
        %v646 = vunpack.c.l.b16 %v537
        %v647 = vunpack.c.l.b16 %v538
        %v648 = vunpack.c.l.b16 %v539
        %v649 = vunpack.c.l.b16 %v540
        %v650 = vunpack.c.l.b16 %v541
        %v651 = vunpack.c.l.b16 %v542
        %v652 = vunpack.c.l.b16 %v543
        %v653 = vpack.c.b16 %v638, %v637
        %v654 = vpack.c.b16 %v640, %v639
        %v655 = vpack.c.b16 %v642, %v641
        %v656 = vpack.c.b16 %v644, %v643
        %v657 = vpack.c.b16 %v646, %v645
        %v658 = vpack.c.b16 %v648, %v647
        %v659 = vpack.c.b16 %v650, %v649
        %v660 = vpack.c.b16 %v652, %v651
        %669 = vmatpush.bf16.msra.mxu0 %v660
        %670 = vmatpush.bf16.msra.mxu0 %v659
        %671 = vmatpush.bf16.msra.mxu0 %v658
        %672 = vmatpush.bf16.msra.mxu0 %v657
        %673 = vmatpush.bf16.msra.mxu0 %v656
        %674 = vmatpush.bf16.msra.mxu0 %v655
        %675 = vmatpush.bf16.msra.mxu0 %v654
        %676 = vmatpush.bf16.msra.mxu0 %v653
        %677 = vmatmul.bf16.gmra.mxu0 %v526
        %v678 = vpop.f32.mrf.mxu0
        %v679 = vadd.f32 %v618, %v678
        %v680 = vpop.f32.mrf.mxu0
        %681 = vdwg.mxu0
        %v682 = vld [vmem:[%s6] sm:$0x1]
        %v684 = vperm.slane %v682, 0
        %v686 = vadd.f32 %v679, %v684
        %v687 = vmax.f32 %v686, 0.0
        %v688 = vpack.c.bf16 %v687, %v687
        %v689 = vld [vmem:[%s7] sm:$0xf]
        %v690 = vld [vmem:[%s7 + $0x4] sm:$0xf]
        %v691 = vld [vmem:[%s7 + $0x8] sm:$0xf]
        %v692 = vld [vmem:[%s7 + $0xc] sm:$0xf]
        %v693 = vld [vmem:[%s7 + $0x10] sm:$0xf]
        %v694 = vld [vmem:[%s7 + $0x14] sm:$0xf]
        %v695 = vld [vmem:[%s7 + $0x18] sm:$0xf]
        %v696 = vld [vmem:[%s7 + $0x1c] sm:$0xf]
        %v697 = vld [vmem:[%s7 + $0x20] sm:$0xf]
        %v698 = vld [vmem:[%s7 + $0x24] sm:$0xf]
        %v699 = vld [vmem:[%s7 + $0x28] sm:$0xf]
        %v700 = vld [vmem:[%s7 + $0x2c] sm:$0xf]
        %v701 = vld [vmem:[%s7 + $0x30] sm:$0xf]
        %v702 = vld [vmem:[%s7 + $0x34] sm:$0xf]
        %v703 = vld [vmem:[%s7 + $0x38] sm:$0xf]
        %v704 = vld [vmem:[%s7 + $0x3c] sm:$0xf]
        %v705 = vld [vmem:[%s8] sm:$0x1]
        %v707 = vperm.slane %v705, 0
        %v725 = vunpack.c.l.b16 %v689
        %v726 = vunpack.c.l.b16 %v690
        %v727 = vunpack.c.l.b16 %v691
        %v728 = vunpack.c.l.b16 %v692
        %v729 = vunpack.c.l.b16 %v693
        %v730 = vunpack.c.l.b16 %v694
        %v731 = vunpack.c.l.b16 %v695
        %v732 = vunpack.c.l.b16 %v696
        %v733 = vunpack.c.l.b16 %v697
        %v734 = vunpack.c.l.b16 %v698
        %v735 = vunpack.c.l.b16 %v699
        %v736 = vunpack.c.l.b16 %v700
        %v737 = vunpack.c.l.b16 %v701
        %v738 = vunpack.c.l.b16 %v702
        %v739 = vunpack.c.l.b16 %v703
        %v740 = vunpack.c.l.b16 %v704
        %v741 = vpack.c.b16 %v726, %v725
        %v742 = vpack.c.b16 %v728, %v727
        %v743 = vpack.c.b16 %v730, %v729
        %v744 = vpack.c.b16 %v732, %v731
        %v745 = vpack.c.b16 %v734, %v733
        %v746 = vpack.c.b16 %v736, %v735
        %v747 = vpack.c.b16 %v738, %v737
        %v748 = vpack.c.b16 %v740, %v739
        %757 = vmatpush.bf16.msra.mxu0 %v748
        %758 = vmatpush.bf16.msra.mxu0 %v747
        %759 = vmatpush.bf16.msra.mxu0 %v746
        %760 = vmatpush.bf16.msra.mxu0 %v745
        %761 = vmatpush.bf16.msra.mxu0 %v744
        %762 = vmatpush.bf16.msra.mxu0 %v743
        %763 = vmatpush.bf16.msra.mxu0 %v742
        %764 = vmatpush.bf16.msra.mxu0 %v741
        %765 = vmatmul.bf16.gmra.mxu0 %v688
        %v766 = vpop.f32.mrf.mxu0
        %v767 = vadd.f32 %v707, %v766
        %v768 = vpop.f32.mrf.mxu0
        %769 = vdwg.mxu0
        %v770 = vmax.f32 %v767, 0.0
        %v771 = vpack.c.bf16 %v770, %v770
        %v772 = vld [vmem:[%s9] sm:$0xf]
        %v773 = vld [vmem:[%s9 + $0x4] sm:$0xf]
        %v774 = vld [vmem:[%s9 + $0x8] sm:$0xf]
        %v775 = vld [vmem:[%s9 + $0xc] sm:$0xf]
        %v776 = vld [vmem:[%s9 + $0x10] sm:$0xf]
        %v777 = vld [vmem:[%s9 + $0x14] sm:$0xf]
        %v778 = vld [vmem:[%s9 + $0x18] sm:$0xf]
        %v779 = vld [vmem:[%s9 + $0x1c] sm:$0xf]
        %v780 = vld [vmem:[%s10] sm:$0x1]
        %v782 = vperm.slane %v780, 0
        %v792 = vunpack.c.l.b16 %v772
        %v793 = vunpack.c.l.b16 %v773
        %v794 = vunpack.c.l.b16 %v774
        %v795 = vunpack.c.l.b16 %v775
        %v796 = vunpack.c.l.b16 %v776
        %v797 = vunpack.c.l.b16 %v777
        %v798 = vunpack.c.l.b16 %v778
        %v799 = vunpack.c.l.b16 %v779
        %v800 = vpack.c.b16 %v793, %v792
        %v801 = vpack.c.b16 %v795, %v794
        %v802 = vpack.c.b16 %v797, %v796
        %v803 = vpack.c.b16 %v799, %v798
        %vm808 = vcmask 523264
        %v810 = vsel %vm808, %v771, 0
        %812 = vmatpush.bf16.msra.mxu0 0
        %813 = vmatpush.bf16.msra.mxu0 0
        %814 = vmatpush.bf16.msra.mxu0 0
        %815 = vmatpush.bf16.msra.mxu0 0
        %816 = vmatpush.bf16.msra.mxu0 %v803
        %817 = vmatpush.bf16.msra.mxu0 %v802
        %818 = vmatpush.bf16.msra.mxu0 %v801
        %819 = vmatpush.bf16.msra.mxu0 %v800
        %820 = vmatmul.bf16.gmra.mxu0 %v810
        %v821 = vpop.f32.mrf.mxu0
        %v822 = vadd.f32 %v782, %v821
        %v823 = vpop.f32.mrf.mxu0
        %824 = vdwg.mxu0
        %v825 = vmax.f32 %v822, 0.0
        %v826 = vpack.c.bf16 %v825, %v825
        %v827 = vld [vmem:[%s11] sm:$0xf]
        %v828 = vld [vmem:[%s11 + $0x4] sm:$0xf]
        %v829 = vld [vmem:[%s11 + $0x8] sm:$0xf]
        %v830 = vld [vmem:[%s11 + $0xc] sm:$0xf]
        %v831 = vld [vmem:[%s12] sm:$0x1]
        %v833 = vperm.slane %v831, 0
        %v839 = vunpack.c.l.b16 %v827
        %v840 = vunpack.c.l.b16 %v828
        %v841 = vunpack.c.l.b16 %v829
        %v842 = vunpack.c.l.b16 %v830
        %v843 = vpack.c.b16 %v840, %v839
        %v844 = vpack.c.b16 %v842, %v841
        %vm847 = vcmask 261120
        %v849 = vsel %vm847, %v826, 0
        %851 = vmatpush.bf16.msra.mxu0 0
        %852 = vmatpush.bf16.msra.mxu0 0
        %853 = vmatpush.bf16.msra.mxu0 0
        %854 = vmatpush.bf16.msra.mxu0 0
        %855 = vmatpush.bf16.msra.mxu0 0
        %856 = vmatpush.bf16.msra.mxu0 0
        %857 = vmatpush.bf16.msra.mxu0 %v844
        %858 = vmatpush.bf16.msra.mxu0 %v843
        %859 = vmatmul.bf16.gmra.mxu0 %v849
        %v860 = vpop.f32.mrf.mxu0
        %v861 = vadd.f32 %v833, %v860
        %v862 = vpop.f32.mrf.mxu0
        %863 = vdwg.mxu0
        %v864 = vmax.f32 %v861, 0.0
        %v865 = vmul.f32 %v524, %v525
        %v866 = vpack.c.bf16 %v865, %v865
        %v867 = vld [vmem:[%s13] sm:$0xf]
        %v868 = vld [vmem:[%s13 + $0x4] sm:$0xf]
        %v869 = vld [vmem:[%s13 + $0x8] sm:$0xf]
        %v870 = vld [vmem:[%s13 + $0xc] sm:$0xf]
        %v871 = vld [vmem:[%s13 + $0x10] sm:$0xf]
        %v872 = vld [vmem:[%s13 + $0x14] sm:$0xf]
        %v873 = vld [vmem:[%s13 + $0x18] sm:$0xf]
        %v874 = vld [vmem:[%s13 + $0x1c] sm:$0xf]
        %v875 = vld [vmem:[%s13 + $0x20] sm:$0xf]
        %v876 = vld [vmem:[%s13 + $0x24] sm:$0xf]
        %v877 = vld [vmem:[%s13 + $0x28] sm:$0xf]
        %v878 = vld [vmem:[%s13 + $0x2c] sm:$0xf]
        %v879 = vld [vmem:[%s13 + $0x30] sm:$0xf]
        %v880 = vld [vmem:[%s13 + $0x34] sm:$0xf]
        %v881 = vld [vmem:[%s13 + $0x38] sm:$0xf]
        %v882 = vld [vmem:[%s13 + $0x3c] sm:$0xf]
        %v883 = vpack.c.bf16 %v864, %v864
        %v884 = vld [vmem:[%s14] sm:$0xf]
        %v885 = vld [vmem:[%s14 + $0x4] sm:$0xf]
        %v888 = vunpack.c.l.b16 %v884
        %v889 = vunpack.c.l.b16 %v885
        %v890 = vpack.c.b16 %v889, %v888
        %vm892 = vcmask 130048
        %v894 = vsel %vm892, %v883, 0
        %896 = vmatpush.bf16.msra.mxu0 0
        %897 = vmatpush.bf16.msra.mxu0 0
        %898 = vmatpush.bf16.msra.mxu0 0
        %899 = vmatpush.bf16.msra.mxu0 0
        %900 = vmatpush.bf16.msra.mxu0 0
        %901 = vmatpush.bf16.msra.mxu0 0
        %902 = vmatpush.bf16.msra.mxu0 0
        %903 = vmatpush.bf16.msra.mxu0 %v890
        %904 = vmatmul.bf16.gmra.mxu0 %v894
        %v905 = vpop.f32.mrf.mxu0
        %v906 = vadd.f32 0.0, %v905
        %v907 = vpop.f32.mrf.mxu0
        %908 = vdwg.mxu0
        %v925 = vunpack.c.l.b16 %v867
        %v926 = vunpack.c.l.b16 %v868
        %v927 = vunpack.c.l.b16 %v869
        %v928 = vunpack.c.l.b16 %v870
        %v929 = vunpack.c.l.b16 %v871
        %v930 = vunpack.c.l.b16 %v872
        %v931 = vunpack.c.l.b16 %v873
        %v932 = vunpack.c.l.b16 %v874
        %v933 = vunpack.c.l.b16 %v875
        %v934 = vunpack.c.l.b16 %v876
        %v935 = vunpack.c.l.b16 %v877
        %v936 = vunpack.c.l.b16 %v878
        %v937 = vunpack.c.l.b16 %v879
        %v938 = vunpack.c.l.b16 %v880
        %v939 = vunpack.c.l.b16 %v881
        %v940 = vunpack.c.l.b16 %v882
        %v941 = vpack.c.b16 %v926, %v925
        %v942 = vpack.c.b16 %v928, %v927
        %v943 = vpack.c.b16 %v930, %v929
        %v944 = vpack.c.b16 %v932, %v931
        %v945 = vpack.c.b16 %v934, %v933
        %v946 = vpack.c.b16 %v936, %v935
        %v947 = vpack.c.b16 %v938, %v937
        %v948 = vpack.c.b16 %v940, %v939
        %957 = vmatpush.bf16.msra.mxu0 %v948
        %958 = vmatpush.bf16.msra.mxu0 %v947
        %959 = vmatpush.bf16.msra.mxu0 %v946
        %960 = vmatpush.bf16.msra.mxu0 %v945
        %961 = vmatpush.bf16.msra.mxu0 %v944
        %962 = vmatpush.bf16.msra.mxu0 %v943
        %963 = vmatpush.bf16.msra.mxu0 %v942
        %964 = vmatpush.bf16.msra.mxu0 %v941
        %965 = vmatmul.bf16.gmra.mxu0 %v866
        %v966 = vpop.f32.mrf.mxu0
        %v967 = vadd.f32 %v906, %v966
        %v968 = vpop.f32.mrf.mxu0
        %969 = vdwg.mxu0
        %v970 = vld [vmem:[%s15] sm:$0x1]
        %v972 = vperm.slane %v970, 0
        %v974 = vadd.f32 %v967, %v972
        %vm975 = vcmask 64512
        %v976 = vsel %vm975, %v974, -inf
        %977 = vmax.xlane.f32.xlu0 %v976
        %v978 = vpop.xlane.xlu0 %977
        %v979 = vsub.f32 %v974, %v978
        %v980 = vmul.f32 %v979, 1.442695
        %v981 = vpow.pop %v980
        %v982 = vsel %vm975, %v981, 0.0
        %983 = vadd.xlane.f32.xlu0 %v982
        %v984 = vpop.xlane.xlu0 %983
        %v985 = vrcp.pop %v984
        %v986 = vmul.f32 %v981, %v985
        %987 = vst.msk [vmem:[%s425] sm:$0xff] %vm975, %v986
        %p988 = scmp.lt.s32.totalorder %s41, 2
        %s989 = scalar_select %p988, %s41, 2
        %s990 = smul.addr %s989, 8
        %s991 = scalar_lea.vmem %s16, %s990
        // Predicated region
        $region147: #{tpu_custom_call.1} parent=67 // pred_check
          %p992 = pneg %p311
        $region148: #{tpu_custom_call.1} parent=67 // pred_check_branch
          %994 = sbr.rel (%p992) target = $region150
        $region149: #{tpu_custom_call.1} parent=67 // pred_region
          _
        $region150: #{tpu_custom_call.1} parent=67 // pred_fallthru
          _
      $region68: #{tpu_custom_call.1} parent=5 // pred_fallthru
        _
      %p995 = scmp.le.s32.totalorder 2, %s36
      // Predicated region
      $region151: #{tpu_custom_call.1} parent=5 // pred_check
        %p996 = pneg %p995
      $region152: #{tpu_custom_call.1} parent=5 // pred_check_branch
        %998 = sbr.rel (%p996) target = $region154
      $region153: #{tpu_custom_call.1} parent=5 // pred_region
        %s999 = ssub.s32 %s36, 2
        // Predicated region
        $region155: #{tpu_custom_call.1} parent=153 // pred_check
          %p1000 = pneg %p317
        $region156: #{tpu_custom_call.1} parent=153 // pred_check_branch
          %1002 = sbr.rel (%p1000) target = $region158
        $region157: #{tpu_custom_call.1} parent=153 // pred_region
          %p1003 = scmp.lt.s32.totalorder %s42, 2
          %s1004 = scalar_select %p1003, %s42, 2
          %s1005 = smul.addr %s1004, 8
          %s1006 = scalar_lea.vmem %s16, %s1005
        $region158: #{tpu_custom_call.1} parent=153 // pred_fallthru
          _
      $region154: #{tpu_custom_call.1} parent=5 // pred_fallthru
        _
    $region6: #{tpu_custom_call.1} parent=1 // loop_footer
      %s40 = sadd.s32 1, %s36
    $region7: #{tpu_custom_call.1} parent=1 // loop_footer_branch
      %35 = sbr.rel target = $region3
    $region8: #{tpu_custom_call.1} parent=1 // loop_exit
      _
    %1007 = vsyncpa [#allocation9], 1
    %s1008 = scalar_lea.sflag [#allocation9], 1
    %1009 = vsyncpa %s1008, 1
  %1010 = vsyncmov [#allocation4]
  %s1011 = vpop.sfrf %1010
  %p1012 = scmp.eq.s32.totalorder %s1011, 0
  %p1013 = pneg %p1012
  %1015 = shalt.err (%p1013)
  %s1016 = scalar_lea.sflag [#allocation4], 1
  %1017 = vsyncmov %s1016
  %s1018 = vpop.sfrf %1017
  %p1019 = scmp.eq.s32.totalorder %s1018, 0
  %p1020 = pneg %p1019
  %1022 = shalt.err (%p1020)

</llo_original>
